<compile_context>
chip_gen: v7x
topology: tpu7x:2x2x1
jax: 0.10.0
libtpu: 0.0.40
codegen_flags: <defaults>
</compile_context>

<pallas_src>
import math

import jax
import jax.numpy as jnp
from jax.experimental import pallas as pl
from jax.experimental.pallas import tpu as pltpu

KSIZE = 7
PAD = 3            # conv padding
HALO = 8           # rows staged from each neighbour tile (>= PAD, multiple of 8)
LN_EPS = 1e-5

# rows of the packed (P_ROWS, Cp) parameter operand
ROW_DW0 = 0        # rows 0..6 : depthwise taps
ROW_DWB = 7        # depthwise bias
ROW_G = 8          # LayerNorm gamma
ROW_B = 9          # LayerNorm beta
ROW_PWB = 10       # pointwise bias
P_ROWS = 16


def _round_up(x, m):
    return (x + m - 1) // m * m


def _vmem_capacity_bytes():
    """Best-effort per-core VMEM capacity query (falls back to 128 MiB)."""
    try:
        info = pltpu.get_tpu_info()
        cap = getattr(info, "vmem_capacity_bytes", None)
        if cap:
            return int(cap)
    except Exception:
        pass
    return 128 * 1024 * 1024


def _vmem_estimate(tl, cp, x_bytes, w_bytes, invariant_bufs):
    """Rough per-step VMEM footprint of the kernel."""
    tile = tl * cp * x_bytes
    halo = HALO * cp * x_bytes
    need = 4 * tile                          # centre in + out, double buffered
    need += 2 * 2 * halo                     # two 8-row halos, double buffered
    need += (tl + 2 * HALO) * cp * 4         # f32 window scratch
    need += invariant_bufs * (P_ROWS * cp * 4 + cp * cp * w_bytes)
    return need


def _pick_tile_l(cp, x_bytes, w_bytes, cap):
    # v7x (64 MiB VMEM): stay at 256-512 rows; v5e/v6e (128 MiB): go to 1024.
    cands = (1024, 512, 256) if cap > (96 << 20) else (512, 256)
    budget = cap // 2
    for tl in cands:
        if _vmem_estimate(tl, cp, x_bytes, w_bytes, 2) <= budget:
            return tl
    return cands[-1]


def _make_kernel(true_dim, approx_gelu):
    inv_dim = 1.0 / float(true_dim)
    inv_sqrt2 = 1.0 / math.sqrt(2.0)

    def kernel(xc_ref, xl_ref, xr_ref, par_ref, pww_ref, o_ref, xw_ref):
        # xc_ref : (1, TL, Cp)   centre tile (also the residual), x dtype
        # xl_ref : (1, 8,  Cp)   rows just before the tile (clamped index)
        # xr_ref : (1, 8,  Cp)   rows just after the tile (clamped index)
        # par_ref: (16, Cp) f32  packed dw taps / dw bias / LN affine / pw bias
        # pww_ref: (Cp, Cp)      pointwise weight, (in, out), bf16 or f32
        # o_ref  : (1, TL, Cp)   output tile
        # xw_ref : (TL + 16, Cp) f32 scratch window [left | centre | right]
        j = pl.program_id(1)
        n_l = pl.num_programs(1)
        TL = xc_ref.shape[1]
        Cp = xc_ref.shape[2]

        xc = xc_ref[0].astype(jnp.float32)            # residual + conv centre

        # ---- assemble window (all writes 8-row aligned); halos gated by
        #      pl.when so boundary tiles write zeros instead of copy-then-zero.
        xw_ref[HALO:HALO + TL, :] = xc

        @pl.when(j > 0)
        def _():
            xw_ref[0:HALO, :] = xl_ref[0].astype(jnp.float32)

        @pl.when(j == 0)
        def _():
            xw_ref[0:HALO, :] = jnp.zeros((HALO, Cp), jnp.float32)

        @pl.when(j < n_l - 1)
        def _():
            xw_ref[HALO + TL:HALO + TL + HALO, :] = xr_ref[0].astype(jnp.float32)

        @pl.when(j == n_l - 1)
        def _():
            xw_ref[HALO + TL:HALO + TL + HALO, :] = jnp.zeros((HALO, Cp), jnp.float32)

        # ---- depthwise conv (7 taps, bias folded into tap 0); each tap is a
        #      slice read directly from the scratch ref (no full materialize).
        off = HALO - PAD                               # = 5
        acc = xw_ref[off:off + TL, :] * par_ref[ROW_DW0:ROW_DW0 + 1, :] \
            + par_ref[ROW_DWB:ROW_DWB + 1, :]
        for k in range(1, KSIZE):                      # static unroll
            acc = acc + xw_ref[off + k:off + k + TL, :] \
                      * par_ref[ROW_DW0 + k:ROW_DW0 + k + 1, :]

        # ---- LayerNorm over channels (one-pass stats, true-dim divisor,
        #      variance clamped to avoid rsqrt of a tiny negative).
        s1 = jnp.sum(acc, axis=-1, keepdims=True)
        s2 = jnp.sum(acc * acc, axis=-1, keepdims=True)
        mean = s1 * inv_dim
        var = jnp.maximum(s2 * inv_dim - mean * mean, 0.0)
        h = (acc - mean) * jax.lax.rsqrt(var + LN_EPS)
        h = h * par_ref[ROW_G:ROW_G + 1, :] + par_ref[ROW_B:ROW_B + 1, :]

        # ---- GELU
        if approx_gelu:
            h = jax.nn.gelu(h, approximate=True)       # tanh form -> EUP slot
        else:
            h = 0.5 * h * (1.0 + jax.lax.erf(h * inv_sqrt2))   # exact (PyTorch)

        # ---- pointwise linear on the MXU (f32 accumulation)
        y = jnp.dot(h.astype(pww_ref.dtype), pww_ref[...],
                    preferred_element_type=jnp.float32)
        y = y + par_ref[ROW_PWB:ROW_PWB + 1, :]

        # ---- dropout = identity (eval); residual add in f32
        o_ref[0] = (y + xc).astype(o_ref.dtype)

    return kernel


def dwconv_block_channels_last(x_cl, dw_w, dw_b, ln_g, ln_b, pw_w, pw_b, *,
                               tile_l=None, use_bf16_matmul=True,
                               approx_gelu=False, single_buffer_invariants=True):
    """Fused DWConvBlock forward on channel-last input.

    x_cl: (B, L, C).  dw_w: PyTorch Conv1d weight (C, 1, 7) or (C, 7).
    pw_w: PyTorch Linear weight (out=C, in=C).  Returns (B, L, C), x_cl dtype.
    """
    B, L, C = x_cl.shape

    dw_w = jnp.asarray(dw_w)
    if dw_w.ndim == 3:                                 # PyTorch layout (C, 1, 7)
        dw_w = dw_w.reshape(C, KSIZE)
    assert dw_w.shape == (C, KSIZE)
    dw_w_t = jnp.transpose(dw_w, (1, 0))               # (7, C)

    w_dtype = jnp.bfloat16 if use_bf16_matmul else jnp.float32
    x_bytes = jnp.dtype(x_cl.dtype).itemsize
    w_bytes = jnp.dtype(w_dtype).itemsize

    # ---- tiling / padding geometry ----
    Cp = _round_up(C, 128)                             # lane-dense channel dim
    cap = _vmem_capacity_bytes()
    if tile_l is None:
        tile_l = _pick_tile_l(Cp, x_bytes, w_bytes, cap)
    assert tile_l % 8 == 0
    TL = _round_up(L, 8) if L <= tile_l else tile_l
    Lp = _round_up(L, TL)
    n_l = Lp // TL
    nb8 = TL // 8                                      # 8-row blocks per tile
    nblk8 = Lp // 8                                    # total 8-row blocks

    # pad only when needed (padded rows / channels are exactly zero)
    if (Lp, Cp) != (L, C):
        x_p = jnp.pad(x_cl, ((0, 0), (0, Lp - L), (0, Cp - C)))
    else:
        x_p = x_cl

    # pack small per-channel params into one (16, Cp) f32 operand
    params = jnp.zeros((P_ROWS, Cp), jnp.float32)
    params = params.at[ROW_DW0:ROW_DW0 + KSIZE, :C].set(dw_w_t.astype(jnp.float32))
    params = params.at[ROW_DWB, :C].set(jnp.asarray(dw_b, jnp.float32))
    params = params.at[ROW_G, :C].set(jnp.asarray(ln_g, jnp.float32))
    params = params.at[ROW_B, :C].set(jnp.asarray(ln_b, jnp.float32))
    params = params.at[ROW_PWB, :C].set(jnp.asarray(pw_b, jnp.float32))

    # pointwise weight pre-transposed to (in, out), zero-padded, bf16 by default
    pww = jnp.zeros((Cp, Cp), w_dtype)
    pww = pww.at[:C, :C].set(jnp.transpose(jnp.asarray(pw_w), (1, 0)).astype(w_dtype))

    need = _vmem_estimate(TL, Cp, x_bytes, w_bytes,
                          1 if single_buffer_invariants else 2)
    vmem_limit = int(min(cap * 0.85, max(need * 1.25 + (8 << 20), 32 << 20)))

    kernel = _make_kernel(C, approx_gelu)

    def build(single_buf):
        inv_kwargs = {}
        if single_buf and hasattr(pl, "Buffered"):
            # grid-invariant operands: single-buffered to halve their VMEM use
            inv_kwargs = dict(pipeline_mode=pl.Buffered(1))
        in_specs = [
            # centre tile (pipelined, also the residual)
            pl.BlockSpec((1, TL, Cp), lambda b, j: (b, j, 0)),
            # 8-row left-halo block (clamped; zeroed in kernel at j==0)
            pl.BlockSpec((1, HALO, Cp),
                         lambda b, j: (b, jnp.maximum(j * nb8 - 1, 0), 0)),
            # 8-row right-halo block (clamped; zeroed in kernel at last j)
            pl.BlockSpec((1, HALO, Cp),
                         lambda b, j: (b, jnp.minimum((j + 1) * nb8, nblk8 - 1), 0)),
            # packed small params (grid-invariant)
            pl.BlockSpec((P_ROWS, Cp), lambda b, j: (0, 0), **inv_kwargs),
            # pointwise weight (in, out), grid-invariant
            pl.BlockSpec((Cp, Cp), lambda b, j: (0, 0), **inv_kwargs),
        ]
        return pl.pallas_call(
            kernel,
            out_shape=jax.ShapeDtypeStruct((B, Lp, Cp), x_p.dtype),
            grid_spec=pltpu.PrefetchScalarGridSpec(
                num_scalar_prefetch=0,
                grid=(B, n_l),          # both axes independent -> megacore-shardable
                in_specs=in_specs,
                out_specs=pl.BlockSpec((1, TL, Cp), lambda b, j: (b, j, 0)),
                scratch_shapes=[pltpu.VMEM((TL + 2 * HALO, Cp), jnp.float32)],
            ),
            compiler_params=pltpu.CompilerParams(
                dimension_semantics=("parallel", "parallel"),
                vmem_limit_bytes=vmem_limit,
            ),
        )

    try:
        out = build(single_buffer_invariants)(x_p, x_p, x_p, params, pww)
    except Exception:
        if not single_buffer_invariants:
            raise
        # fallback if pipeline_mode=pl.Buffered(1) is unsupported in this jax
        out = build(False)(x_p, x_p, x_p, params, pww)

    if (Lp, Cp) != (L, C):
        out = out[:, :L, :C]
    return out


def dwconv_block(x, dw_w, dw_b, ln_g, ln_b, pw_w, pw_b, *,
                 tile_l=None, use_bf16_matmul=True, approx_gelu=False,
                 io_bf16=False, single_buffer_invariants=True):
    """PyTorch-layout forward: x (B, C, L) -> (B, C, L).

    Prefer `dwconv_block_channels_last` when the surrounding model keeps
    activations channel-last -- it avoids the two full-HBM transpose passes
    this wrapper needs to match nn.Conv1d's (B, C, L) layout.  With
    io_bf16=True the transposed copy is emitted in bf16 (half-width pass).
    """
    x_cl = jnp.transpose(x, (0, 2, 1))
    if io_bf16:
        x_cl = x_cl.astype(jnp.bfloat16)
    y_cl = dwconv_block_channels_last(
        x_cl, dw_w, dw_b, ln_g, ln_b, pw_w, pw_b,
        tile_l=tile_l, use_bf16_matmul=use_bf16_matmul, approx_gelu=approx_gelu,
        single_buffer_invariants=single_buffer_invariants)
    return jnp.transpose(y_cl, (0, 2, 1)).astype(x.dtype)


def reference(x, dw_w, dw_b, ln_g, ln_b, pw_w, pw_b):
    """Pure-JAX mirror of the PyTorch eval-mode forward."""
    B, C, L = x.shape
    w = jnp.asarray(dw_w).reshape(C, KSIZE)
    xp = jnp.pad(x, ((0, 0), (0, 0), (PAD, PAD)))
    conv = jnp.zeros_like(x)
    for k in range(KSIZE):
        conv = conv + xp[:, :, k:k + L] * w[:, k][None, :, None]
    conv = conv + dw_b[None, :, None]
    h = jnp.transpose(conv, (0, 2, 1))                               # (B, L, C)
    mean = jnp.mean(h, axis=-1, keepdims=True)
    var = jnp.mean((h - mean) ** 2, axis=-1, keepdims=True)
    h = (h - mean) / jnp.sqrt(var + LN_EPS) * ln_g + ln_b
    h = 0.5 * h * (1.0 + jax.lax.erf(h / math.sqrt(2.0)))
    y = jnp.matmul(h, pw_w.T, precision=jax.lax.Precision.HIGHEST) + pw_b
    return jnp.transpose(y, (0, 2, 1)) + x


def _make_params(key, dim):
    ks = jax.random.split(key, 6)
    dw_w = jax.random.normal(ks[0], (dim, 1, KSIZE), jnp.float32) * 0.2   # PyTorch layout
    dw_b = jax.random.normal(ks[1], (dim,), jnp.float32) * 0.1
    ln_g = 1.0 + 0.1 * jax.random.normal(ks[2], (dim,), jnp.float32)
    ln_b = 0.1 * jax.random.normal(ks[3], (dim,), jnp.float32)
    pw_w = jax.random.normal(ks[4], (dim, dim), jnp.float32) / math.sqrt(dim)
    pw_b = jax.random.normal(ks[5], (dim,), jnp.float32) * 0.1
    return dw_w, dw_b, ln_g, ln_b, pw_w, pw_b


if __name__ == "__main__":
    key = jax.random.PRNGKey(0)

    # (B, dim, L, tile_l): test 1 exercises channel padding (32 -> 128) and a
    # 3-tile halo pipeline; test 2 is lane-dense (dim=128) with L padding.
    configs = [(2, 32, 96, 32), (2, 128, 80, 48)]
    for (B, dim, L, tl) in configs:
        key, kx, kp = jax.random.split(key, 3)
        x = jax.random.normal(kx, (B, dim, L), dtype=jnp.float32)
        params = _make_params(kp, dim)
        ref = reference(x, *params)

        # default path: bf16 MXU matmul (f32 accumulate), f32 I/O
        out = jax.block_until_ready(dwconv_block(x, *params, tile_l=tl))
        assert out.shape == (B, dim, L)
        assert jnp.allclose(out, ref, atol=5e-2, rtol=5e-2), \
            f"bf16-matmul mismatch for config {(B, dim, L, tl)}"

        # exact f32 matmul path (tight tolerance)
        out32 = jax.block_until_ready(
            dwconv_block(x, *params, tile_l=tl, use_bf16_matmul=False))
        assert jnp.allclose(out32, ref, atol=1e-3, rtol=1e-3), \
            f"f32 mismatch vs reference for config {(B, dim, L, tl)}"

    # channel-last entry point (no layout passes) with auto tile selection,
    # plus the bf16-I/O variant of the (B, C, L) wrapper.
    B, dim, L = 2, 128, 80
    key, kx, kp = jax.random.split(key, 3)
    x = jax.random.normal(kx, (B, dim, L), dtype=jnp.float32)
    params = _make_params(kp, dim)
    ref = reference(x, *params)

    x_cl = jnp.transpose(x, (0, 2, 1))
    out_cl = jax.block_until_ready(dwconv_block_channels_last(x_cl, *params))
    assert out_cl.shape == (B, L, dim)
    assert jnp.allclose(jnp.transpose(out_cl, (0, 2, 1)), ref,
                        atol=5e-2, rtol=5e-2), "channel-last path mismatch"

    out_bf = jax.block_until_ready(dwconv_block(x, *params, io_bf16=True))
    assert jnp.allclose(out_bf, ref, atol=1e-1, rtol=1e-1), "bf16 I/O path mismatch"

    print("KERNEL_OK")
</pallas_src>

<mosaic_0001>
module attributes {stable_mosaic.version = 11 : i64} {
  func.func @kernel(%arg0: i32, %arg1: i32, %arg2: memref<1x32x128xf32, #tpu.memory_space<vmem>>, %arg3: memref<1x8x128xf32, #tpu.memory_space<vmem>>, %arg4: memref<1x8x128xf32, #tpu.memory_space<vmem>>, %arg5: memref<16x128xf32, #tpu.memory_space<vmem>>, %arg6: memref<128x128xbf16, #tpu.memory_space<vmem>>, %arg7: memref<1x32x128xf32, #tpu.memory_space<vmem>>, %arg8: memref<48x128xf32, #tpu.memory_space<vmem>>) attributes {dimension_semantics = [#tpu.dimension_semantics<parallel>, #tpu.dimension_semantics<parallel>], iteration_bounds = array<i64: 2, 3>, scalar_prefetch = 0 : i64, scratch_operands = 1 : i64, tpu.core_type = #tpu.core_type<tc>, window_params = [{transform_indices = @transform_0, window_bounds = array<i64: 1, 32, 128>}, {transform_indices = @transform_1, window_bounds = array<i64: 1, 8, 128>}, {transform_indices = @transform_2, window_bounds = array<i64: 1, 8, 128>}, {pipeline_mode = #tpu.pipeline_mode<synchronous>, transform_indices = @transform_3, window_bounds = array<i64: 16, 128>}, {pipeline_mode = #tpu.pipeline_mode<synchronous>, transform_indices = @transform_4, window_bounds = array<i64: 128, 128>}, {transform_indices = @transform_5, window_bounds = array<i64: 1, 32, 128>}]} {
    %c0 = arith.constant 0 : index
    %c0_0 = arith.constant 0 : index
    %c0_1 = arith.constant 0 : index
    %0 = vector.load %arg2[%c0, %c0_0, %c0_1] : memref<1x32x128xf32, #tpu.memory_space<vmem>>, vector<1x32x128xf32>
    %1 = vector.shape_cast %0 : vector<1x32x128xf32> to vector<32x128xf32>
    %c8 = arith.constant 8 : index
    %c0_2 = arith.constant 0 : index
    %2 = vector.load %arg8[%c8, %c0_2] : memref<48x128xf32, #tpu.memory_space<vmem>>, vector<32x128xf32>
    tpu.vector_store %arg8[%c8, %c0_2], %1 {strides = array<i32>} : memref<48x128xf32, #tpu.memory_space<vmem>>, vector<32x128xf32>,
    %c0_i32 = arith.constant 0 : i32
    %3 = arith.cmpi sgt, %arg1, %c0_i32 : i32
    %4 = arith.extui %3 : i1 to i32
    %c0_i32_3 = arith.constant 0 : i32
    %5 = arith.cmpi ne, %4, %c0_i32_3 : i32
    scf.if %5 {
      %c0_49 = arith.constant 0 : index
      %c0_50 = arith.constant 0 : index
      %c0_51 = arith.constant 0 : index
      %96 = vector.load %arg3[%c0_49, %c0_50, %c0_51] : memref<1x8x128xf32, #tpu.memory_space<vmem>>, vector<1x8x128xf32>
      %97 = vector.shape_cast %96 : vector<1x8x128xf32> to vector<8x128xf32>
      %c0_52 = arith.constant 0 : index
      %c0_53 = arith.constant 0 : index
      %98 = vector.load %arg8[%c0_52, %c0_53] : memref<48x128xf32, #tpu.memory_space<vmem>>, vector<8x128xf32>
      tpu.vector_store %arg8[%c0_52, %c0_53], %97 {strides = array<i32>} : memref<48x128xf32, #tpu.memory_space<vmem>>, vector<8x128xf32>,
    } else {
    }
    %c0_i32_4 = arith.constant 0 : i32
    %6 = arith.cmpi eq, %arg1, %c0_i32_4 : i32
    %7 = arith.extui %6 : i1 to i32
    %c0_i32_5 = arith.constant 0 : i32
    %8 = arith.cmpi ne, %7, %c0_i32_5 : i32
    scf.if %8 {
      %cst_49 = arith.constant 0.000000e+00 : f32
      %96 = vector.broadcast %cst_49 : f32 to vector<8x128xf32>
      %c0_50 = arith.constant 0 : index
      %c0_51 = arith.constant 0 : index
      %97 = vector.load %arg8[%c0_50, %c0_51] : memref<48x128xf32, #tpu.memory_space<vmem>>, vector<8x128xf32>
      tpu.vector_store %arg8[%c0_50, %c0_51], %96 {strides = array<i32>} : memref<48x128xf32, #tpu.memory_space<vmem>>, vector<8x128xf32>,
    } else {
    }
    %c2_i32 = arith.constant 2 : i32
    %9 = arith.cmpi slt, %arg1, %c2_i32 : i32
    %10 = arith.extui %9 : i1 to i32
    %c0_i32_6 = arith.constant 0 : i32
    %11 = arith.cmpi ne, %10, %c0_i32_6 : i32
    scf.if %11 {
      %c0_49 = arith.constant 0 : index
      %c0_50 = arith.constant 0 : index
      %c0_51 = arith.constant 0 : index
      %96 = vector.load %arg4[%c0_49, %c0_50, %c0_51] : memref<1x8x128xf32, #tpu.memory_space<vmem>>, vector<1x8x128xf32>
      %97 = vector.shape_cast %96 : vector<1x8x128xf32> to vector<8x128xf32>
      %c40 = arith.constant 40 : index
      %c0_52 = arith.constant 0 : index
      %98 = vector.load %arg8[%c40, %c0_52] : memref<48x128xf32, #tpu.memory_space<vmem>>, vector<8x128xf32>
      tpu.vector_store %arg8[%c40, %c0_52], %97 {strides = array<i32>} : memref<48x128xf32, #tpu.memory_space<vmem>>, vector<8x128xf32>,
    } else {
    }
    %c2_i32_7 = arith.constant 2 : i32
    %12 = arith.cmpi eq, %arg1, %c2_i32_7 : i32
    %13 = arith.extui %12 : i1 to i32
    %c0_i32_8 = arith.constant 0 : i32
    %14 = arith.cmpi ne, %13, %c0_i32_8 : i32
    scf.if %14 {
      %cst_49 = arith.constant 0.000000e+00 : f32
      %96 = vector.broadcast %cst_49 : f32 to vector<8x128xf32>
      %c40 = arith.constant 40 : index
      %c0_50 = arith.constant 0 : index
      %97 = vector.load %arg8[%c40, %c0_50] : memref<48x128xf32, #tpu.memory_space<vmem>>, vector<8x128xf32>
      tpu.vector_store %arg8[%c40, %c0_50], %96 {strides = array<i32>} : memref<48x128xf32, #tpu.memory_space<vmem>>, vector<8x128xf32>,
    } else {
    }
    %c5 = arith.constant 5 : index
    %c0_9 = arith.constant 0 : index
    %15 = vector.load %arg8[%c5, %c0_9] : memref<48x128xf32, #tpu.memory_space<vmem>>, vector<32x128xf32>
    %c0_10 = arith.constant 0 : index
    %c0_11 = arith.constant 0 : index
    %16 = vector.load %arg5[%c0_10, %c0_11] : memref<16x128xf32, #tpu.memory_space<vmem>>, vector<1x128xf32>
    %17 = vector.broadcast %16 : vector<1x128xf32> to vector<32x128xf32>
    %18 = arith.mulf %15, %17 : vector<32x128xf32>
    %c7 = arith.constant 7 : index
    %c0_12 = arith.constant 0 : index
    %19 = vector.load %arg5[%c7, %c0_12] : memref<16x128xf32, #tpu.memory_space<vmem>>, vector<1x128xf32>
    %20 = vector.broadcast %19 : vector<1x128xf32> to vector<32x128xf32>
    %21 = arith.addf %18, %20 : vector<32x128xf32>
    %c6 = arith.constant 6 : index
    %c0_13 = arith.constant 0 : index
    %22 = vector.load %arg8[%c6, %c0_13] : memref<48x128xf32, #tpu.memory_space<vmem>>, vector<32x128xf32>
    %c1 = arith.constant 1 : index
    %c0_14 = arith.constant 0 : index
    %23 = vector.load %arg5[%c1, %c0_14] : memref<16x128xf32, #tpu.memory_space<vmem>>, vector<1x128xf32>
    %24 = vector.broadcast %23 : vector<1x128xf32> to vector<32x128xf32>
    %25 = arith.mulf %22, %24 : vector<32x128xf32>
    %26 = arith.addf %21, %25 : vector<32x128xf32>
    %c7_15 = arith.constant 7 : index
    %c0_16 = arith.constant 0 : index
    %27 = vector.load %arg8[%c7_15, %c0_16] : memref<48x128xf32, #tpu.memory_space<vmem>>, vector<32x128xf32>
    %c2 = arith.constant 2 : index
    %c0_17 = arith.constant 0 : index
    %28 = vector.load %arg5[%c2, %c0_17] : memref<16x128xf32, #tpu.memory_space<vmem>>, vector<1x128xf32>
    %29 = vector.broadcast %28 : vector<1x128xf32> to vector<32x128xf32>
    %30 = arith.mulf %27, %29 : vector<32x128xf32>
    %31 = arith.addf %26, %30 : vector<32x128xf32>
    %c8_18 = arith.constant 8 : index
    %c0_19 = arith.constant 0 : index
    %32 = vector.load %arg8[%c8_18, %c0_19] : memref<48x128xf32, #tpu.memory_space<vmem>>, vector<32x128xf32>
    %c3 = arith.constant 3 : index
    %c0_20 = arith.constant 0 : index
    %33 = vector.load %arg5[%c3, %c0_20] : memref<16x128xf32, #tpu.memory_space<vmem>>, vector<1x128xf32>
    %34 = vector.broadcast %33 : vector<1x128xf32> to vector<32x128xf32>
    %35 = arith.mulf %32, %34 : vector<32x128xf32>
    %36 = arith.addf %31, %35 : vector<32x128xf32>
    %c9 = arith.constant 9 : index
    %c0_21 = arith.constant 0 : index
    %37 = vector.load %arg8[%c9, %c0_21] : memref<48x128xf32, #tpu.memory_space<vmem>>, vector<32x128xf32>
    %c4 = arith.constant 4 : index
    %c0_22 = arith.constant 0 : index
    %38 = vector.load %arg5[%c4, %c0_22] : memref<16x128xf32, #tpu.memory_space<vmem>>, vector<1x128xf32>
    %39 = vector.broadcast %38 : vector<1x128xf32> to vector<32x128xf32>
    %40 = arith.mulf %37, %39 : vector<32x128xf32>
    %41 = arith.addf %36, %40 : vector<32x128xf32>
    %c10 = arith.constant 10 : index
    %c0_23 = arith.constant 0 : index
    %42 = vector.load %arg8[%c10, %c0_23] : memref<48x128xf32, #tpu.memory_space<vmem>>, vector<32x128xf32>
    %c5_24 = arith.constant 5 : index
    %c0_25 = arith.constant 0 : index
    %43 = vector.load %arg5[%c5_24, %c0_25] : memref<16x128xf32, #tpu.memory_space<vmem>>, vector<1x128xf32>
    %44 = vector.broadcast %43 : vector<1x128xf32> to vector<32x128xf32>
    %45 = arith.mulf %42, %44 : vector<32x128xf32>
    %46 = arith.addf %41, %45 : vector<32x128xf32>
    %c11 = arith.constant 11 : index
    %c0_26 = arith.constant 0 : index
    %47 = vector.load %arg8[%c11, %c0_26] : memref<48x128xf32, #tpu.memory_space<vmem>>, vector<32x128xf32>
    %c6_27 = arith.constant 6 : index
    %c0_28 = arith.constant 0 : index
    %48 = vector.load %arg5[%c6_27, %c0_28] : memref<16x128xf32, #tpu.memory_space<vmem>>, vector<1x128xf32>
    %49 = vector.broadcast %48 : vector<1x128xf32> to vector<32x128xf32>
    %50 = arith.mulf %47, %49 : vector<32x128xf32>
    %51 = arith.addf %46, %50 : vector<32x128xf32>
    %cst = arith.constant dense<0.000000e+00> : vector<32xf32>
    %52 = vector.multi_reduction <add>, %51, %cst [1] : vector<32x128xf32> to vector<32xf32>
    %53 = vector.shape_cast %52 : vector<32xf32> to vector<32x1xf32>
    %54 = arith.mulf %51, %51 : vector<32x128xf32>
    %cst_29 = arith.constant dense<0.000000e+00> : vector<32xf32>
    %55 = vector.multi_reduction <add>, %54, %cst_29 [1] : vector<32x128xf32> to vector<32xf32>
    %56 = vector.shape_cast %55 : vector<32xf32> to vector<32x1xf32>
    %cst_30 = arith.constant 3.125000e-02 : f32
    %57 = vector.broadcast %cst_30 : f32 to vector<32x1xf32>
    %58 = arith.mulf %53, %57 : vector<32x1xf32>
    %cst_31 = arith.constant 3.125000e-02 : f32
    %59 = vector.broadcast %cst_31 : f32 to vector<32x1xf32>
    %60 = arith.mulf %56, %59 : vector<32x1xf32>
    %61 = arith.mulf %58, %58 : vector<32x1xf32>
    %62 = arith.subf %60, %61 : vector<32x1xf32>
    %cst_32 = arith.constant 0.000000e+00 : f32
    %63 = vector.broadcast %cst_32 : f32 to vector<32x1xf32>
    %64 = arith.maximumf %62, %63 : vector<32x1xf32>
    %65 = vector.broadcast %58 : vector<32x1xf32> to vector<32x128xf32>
    %66 = arith.subf %51, %65 : vector<32x128xf32>
    %cst_33 = arith.constant 9.99999974E-6 : f32
    %67 = vector.broadcast %cst_33 : f32 to vector<32x1xf32>
    %68 = arith.addf %64, %67 : vector<32x1xf32>
    %69 = math.rsqrt %68 : vector<32x1xf32>
    %70 = vector.broadcast %69 : vector<32x1xf32> to vector<32x128xf32>
    %71 = arith.mulf %66, %70 : vector<32x128xf32>
    %c8_34 = arith.constant 8 : index
    %c0_35 = arith.constant 0 : index
    %72 = vector.load %arg5[%c8_34, %c0_35] : memref<16x128xf32, #tpu.memory_space<vmem>>, vector<1x128xf32>
    %73 = vector.broadcast %72 : vector<1x128xf32> to vector<32x128xf32>
    %74 = arith.mulf %71, %73 : vector<32x128xf32>
    %c9_36 = arith.constant 9 : index
    %c0_37 = arith.constant 0 : index
    %75 = vector.load %arg5[%c9_36, %c0_37] : memref<16x128xf32, #tpu.memory_space<vmem>>, vector<1x128xf32>
    %76 = vector.broadcast %75 : vector<1x128xf32> to vector<32x128xf32>
    %77 = arith.addf %74, %76 : vector<32x128xf32>
    %cst_38 = arith.constant 5.000000e-01 : f32
    %78 = vector.broadcast %cst_38 : f32 to vector<32x128xf32>
    %79 = arith.mulf %78, %77 : vector<32x128xf32>
    %cst_39 = arith.constant 0.707106769 : f32
    %80 = vector.broadcast %cst_39 : f32 to vector<32x128xf32>
    %81 = arith.mulf %77, %80 : vector<32x128xf32>
    %82 = math.erf %81 : vector<32x128xf32>
    %cst_40 = arith.constant 1.000000e+00 : f32
    %83 = vector.broadcast %cst_40 : f32 to vector<32x128xf32>
    %84 = arith.addf %83, %82 : vector<32x128xf32>
    %85 = arith.mulf %79, %84 : vector<32x128xf32>
    %86 = arith.truncf %85 : vector<32x128xf32> to vector<32x128xbf16>
    %c0_41 = arith.constant 0 : index
    %c0_42 = arith.constant 0 : index
    %87 = vector.load %arg6[%c0_41, %c0_42] : memref<128x128xbf16, #tpu.memory_space<vmem>>, vector<128x128xbf16>
    %cst_43 = arith.constant dense<0.000000e+00> : vector<32x128xf32>
    %88 = tpu.matmul %86, %87, %cst_43 {dimension_numbers = #tpu.dot_dimension_numbers<[1], [0], [0], [1], [0, 0, 1, 1], [], []>} : vector<32x128xbf16>, vector<128x128xbf16>, vector<32x128xf32> -> vector<32x128xf32>
    %c10_44 = arith.constant 10 : index
    %c0_45 = arith.constant 0 : index
    %89 = vector.load %arg5[%c10_44, %c0_45] : memref<16x128xf32, #tpu.memory_space<vmem>>, vector<1x128xf32>
    %90 = vector.broadcast %89 : vector<1x128xf32> to vector<32x128xf32>
    %91 = arith.addf %88, %90 : vector<32x128xf32>
    %92 = arith.addf %91, %1 : vector<32x128xf32>
    %c0_46 = arith.constant 0 : index
    %c0_47 = arith.constant 0 : index
    %c0_48 = arith.constant 0 : index
    %93 = vector.load %arg7[%c0_46, %c0_47, %c0_48] : memref<1x32x128xf32, #tpu.memory_space<vmem>>, vector<1x32x128xf32>
    %94 = vector.shape_cast %93 : vector<1x32x128xf32> to vector<32x128xf32>
    %95 = vector.shape_cast %92 : vector<32x128xf32> to vector<1x32x128xf32>
    tpu.vector_store %arg7[%c0_46, %c0_47, %c0_48], %95 {strides = array<i32>} : memref<1x32x128xf32, #tpu.memory_space<vmem>>, vector<1x32x128xf32>,
    return
  }
  func.func @transform_0(%arg0: i32, %arg1: i32) -> (i32, i32, i32) {
    %c0_i32 = arith.constant 0 : i32
    %c0_i32_0 = arith.constant 0 : i32
    return %arg0, %arg1, %c0_i32 : i32, i32, i32
  }
  func.func @transform_1(%arg0: i32, %arg1: i32) -> (i32, i32, i32) {
    %c4_i32 = arith.constant 4 : i32
    %0 = arith.muli %arg1, %c4_i32 : i32
    %c1_i32 = arith.constant 1 : i32
    %1 = arith.subi %0, %c1_i32 : i32
    %c0_i32 = arith.constant 0 : i32
    %2 = arith.maxsi %1, %c0_i32 : i32
    %c0_i32_0 = arith.constant 0 : i32
    %c0_i32_1 = arith.constant 0 : i32
    return %arg0, %2, %c0_i32_0 : i32, i32, i32
  }
  func.func @transform_2(%arg0: i32, %arg1: i32) -> (i32, i32, i32) {
    %c1_i32 = arith.constant 1 : i32
    %0 = arith.addi %arg1, %c1_i32 : i32
    %c4_i32 = arith.constant 4 : i32
    %1 = arith.muli %0, %c4_i32 : i32
    %c11_i32 = arith.constant 11 : i32
    %2 = arith.minsi %1, %c11_i32 : i32
    %c0_i32 = arith.constant 0 : i32
    %c0_i32_0 = arith.constant 0 : i32
    return %arg0, %2, %c0_i32 : i32, i32, i32
  }
  func.func @transform_3(%arg0: i32, %arg1: i32) -> (i32, i32) {
    %c0_i32 = arith.constant 0 : i32
    %c0_i32_0 = arith.constant 0 : i32
    %c0_i32_1 = arith.constant 0 : i32
    return %c0_i32, %c0_i32_0 : i32, i32
  }
  func.func @transform_4(%arg0: i32, %arg1: i32) -> (i32, i32) {
    %c0_i32 = arith.constant 0 : i32
    %c0_i32_0 = arith.constant 0 : i32
    %c0_i32_1 = arith.constant 0 : i32
    return %c0_i32, %c0_i32_0 : i32, i32
  }
  func.func @transform_5(%arg0: i32, %arg1: i32) -> (i32, i32, i32) {
    %c0_i32 = arith.constant 0 : i32
    %c0_i32_0 = arith.constant 0 : i32
    return %arg0, %arg1, %c0_i32 : i32, i32, i32
  }
}

module attributes {stable_mosaic.version = 11 : i64} {
  func.func @kernel(%arg0: i32, %arg1: i32, %arg2: memref<1x32x128xf32, #tpu.memory_space<vmem>>, %arg3: memref<1x8x128xf32, #tpu.memory_space<vmem>>, %arg4: memref<1x8x128xf32, #tpu.memory_space<vmem>>, %arg5: memref<16x128xf32, #tpu.memory_space<vmem>>, %arg6: memref<128x128xbf16, #tpu.memory_space<vmem>>, %arg7: memref<1x32x128xf32, #tpu.memory_space<vmem>>, %arg8: memref<48x128xf32, #tpu.memory_space<vmem>>) attributes {dimension_semantics = [#tpu.dimension_semantics<parallel>, #tpu.dimension_semantics<parallel>], iteration_bounds = array<i64: 2, 3>, scalar_prefetch = 0 : i64, scratch_operands = 1 : i64, tpu.core_type = #tpu.core_type<tc>, window_params = [{transform_indices = @transform_0, window_bounds = array<i64: 1, 32, 128>}, {transform_indices = @transform_1, window_bounds = array<i64: 1, 8, 128>}, {transform_indices = @transform_2, window_bounds = array<i64: 1, 8, 128>}, {pipeline_mode = #tpu.pipeline_mode<synchronous>, transform_indices = @transform_3, window_bounds = array<i64: 16, 128>}, {pipeline_mode = #tpu.pipeline_mode<synchronous>, transform_indices = @transform_4, window_bounds = array<i64: 128, 128>}, {transform_indices = @transform_5, window_bounds = array<i64: 1, 32, 128>}]} {
    %c0 = arith.constant 0 : index
    %c0_0 = arith.constant 0 : index
    %c0_1 = arith.constant 0 : index
    %0 = vector.load %arg2[%c0, %c0_0, %c0_1] : memref<1x32x128xf32, #tpu.memory_space<vmem>>, vector<1x32x128xf32>
    %1 = vector.shape_cast %0 : vector<1x32x128xf32> to vector<32x128xf32>
    %c8 = arith.constant 8 : index
    %c0_2 = arith.constant 0 : index
    %2 = vector.load %arg8[%c8, %c0_2] : memref<48x128xf32, #tpu.memory_space<vmem>>, vector<32x128xf32>
    tpu.vector_store %arg8[%c8, %c0_2], %1 {strides = array<i32>} : memref<48x128xf32, #tpu.memory_space<vmem>>, vector<32x128xf32>,
    %c0_i32 = arith.constant 0 : i32
    %3 = arith.cmpi sgt, %arg1, %c0_i32 : i32
    %4 = arith.extui %3 : i1 to i32
    %c0_i32_3 = arith.constant 0 : i32
    %5 = arith.cmpi ne, %4, %c0_i32_3 : i32
    scf.if %5 {
      %c0_49 = arith.constant 0 : index
      %c0_50 = arith.constant 0 : index
      %c0_51 = arith.constant 0 : index
      %96 = vector.load %arg3[%c0_49, %c0_50, %c0_51] : memref<1x8x128xf32, #tpu.memory_space<vmem>>, vector<1x8x128xf32>
      %97 = vector.shape_cast %96 : vector<1x8x128xf32> to vector<8x128xf32>
      %c0_52 = arith.constant 0 : index
      %c0_53 = arith.constant 0 : index
      %98 = vector.load %arg8[%c0_52, %c0_53] : memref<48x128xf32, #tpu.memory_space<vmem>>, vector<8x128xf32>
      tpu.vector_store %arg8[%c0_52, %c0_53], %97 {strides = array<i32>} : memref<48x128xf32, #tpu.memory_space<vmem>>, vector<8x128xf32>,
    } else {
    }
    %c0_i32_4 = arith.constant 0 : i32
    %6 = arith.cmpi eq, %arg1, %c0_i32_4 : i32
    %7 = arith.extui %6 : i1 to i32
    %c0_i32_5 = arith.constant 0 : i32
    %8 = arith.cmpi ne, %7, %c0_i32_5 : i32
    scf.if %8 {
      %cst_49 = arith.constant 0.000000e+00 : f32
      %96 = vector.broadcast %cst_49 : f32 to vector<8x128xf32>
      %c0_50 = arith.constant 0 : index
      %c0_51 = arith.constant 0 : index
      %97 = vector.load %arg8[%c0_50, %c0_51] : memref<48x128xf32, #tpu.memory_space<vmem>>, vector<8x128xf32>
      tpu.vector_store %arg8[%c0_50, %c0_51], %96 {strides = array<i32>} : memref<48x128xf32, #tpu.memory_space<vmem>>, vector<8x128xf32>,
    } else {
    }
    %c2_i32 = arith.constant 2 : i32
    %9 = arith.cmpi slt, %arg1, %c2_i32 : i32
    %10 = arith.extui %9 : i1 to i32
    %c0_i32_6 = arith.constant 0 : i32
    %11 = arith.cmpi ne, %10, %c0_i32_6 : i32
    scf.if %11 {
      %c0_49 = arith.constant 0 : index
      %c0_50 = arith.constant 0 : index
      %c0_51 = arith.constant 0 : index
      %96 = vector.load %arg4[%c0_49, %c0_50, %c0_51] : memref<1x8x128xf32, #tpu.memory_space<vmem>>, vector<1x8x128xf32>
      %97 = vector.shape_cast %96 : vector<1x8x128xf32> to vector<8x128xf32>
      %c40 = arith.constant 40 : index
      %c0_52 = arith.constant 0 : index
      %98 = vector.load %arg8[%c40, %c0_52] : memref<48x128xf32, #tpu.memory_space<vmem>>, vector<8x128xf32>
      tpu.vector_store %arg8[%c40, %c0_52], %97 {strides = array<i32>} : memref<48x128xf32, #tpu.memory_space<vmem>>, vector<8x128xf32>,
    } else {
    }
    %c2_i32_7 = arith.constant 2 : i32
    %12 = arith.cmpi eq, %arg1, %c2_i32_7 : i32
    %13 = arith.extui %12 : i1 to i32
    %c0_i32_8 = arith.constant 0 : i32
    %14 = arith.cmpi ne, %13, %c0_i32_8 : i32
    scf.if %14 {
      %cst_49 = arith.constant 0.000000e+00 : f32
      %96 = vector.broadcast %cst_49 : f32 to vector<8x128xf32>
      %c40 = arith.constant 40 : index
      %c0_50 = arith.constant 0 : index
      %97 = vector.load %arg8[%c40, %c0_50] : memref<48x128xf32, #tpu.memory_space<vmem>>, vector<8x128xf32>
      tpu.vector_store %arg8[%c40, %c0_50], %96 {strides = array<i32>} : memref<48x128xf32, #tpu.memory_space<vmem>>, vector<8x128xf32>,
    } else {
    }
    %c5 = arith.constant 5 : index
    %c0_9 = arith.constant 0 : index
    %15 = vector.load %arg8[%c5, %c0_9] : memref<48x128xf32, #tpu.memory_space<vmem>>, vector<32x128xf32>
    %c0_10 = arith.constant 0 : index
    %c0_11 = arith.constant 0 : index
    %16 = vector.load %arg5[%c0_10, %c0_11] : memref<16x128xf32, #tpu.memory_space<vmem>>, vector<1x128xf32>
    %17 = vector.broadcast %16 : vector<1x128xf32> to vector<32x128xf32>
    %18 = arith.mulf %15, %17 : vector<32x128xf32>
    %c7 = arith.constant 7 : index
    %c0_12 = arith.constant 0 : index
    %19 = vector.load %arg5[%c7, %c0_12] : memref<16x128xf32, #tpu.memory_space<vmem>>, vector<1x128xf32>
    %20 = vector.broadcast %19 : vector<1x128xf32> to vector<32x128xf32>
    %21 = arith.addf %18, %20 : vector<32x128xf32>
    %c6 = arith.constant 6 : index
    %c0_13 = arith.constant 0 : index
    %22 = vector.load %arg8[%c6, %c0_13] : memref<48x128xf32, #tpu.memory_space<vmem>>, vector<32x128xf32>
    %c1 = arith.constant 1 : index
    %c0_14 = arith.constant 0 : index
    %23 = vector.load %arg5[%c1, %c0_14] : memref<16x128xf32, #tpu.memory_space<vmem>>, vector<1x128xf32>
    %24 = vector.broadcast %23 : vector<1x128xf32> to vector<32x128xf32>
    %25 = arith.mulf %22, %24 : vector<32x128xf32>
    %26 = arith.addf %21, %25 : vector<32x128xf32>
    %c7_15 = arith.constant 7 : index
    %c0_16 = arith.constant 0 : index
    %27 = vector.load %arg8[%c7_15, %c0_16] : memref<48x128xf32, #tpu.memory_space<vmem>>, vector<32x128xf32>
    %c2 = arith.constant 2 : index
    %c0_17 = arith.constant 0 : index
    %28 = vector.load %arg5[%c2, %c0_17] : memref<16x128xf32, #tpu.memory_space<vmem>>, vector<1x128xf32>
    %29 = vector.broadcast %28 : vector<1x128xf32> to vector<32x128xf32>
    %30 = arith.mulf %27, %29 : vector<32x128xf32>
    %31 = arith.addf %26, %30 : vector<32x128xf32>
    %c8_18 = arith.constant 8 : index
    %c0_19 = arith.constant 0 : index
    %32 = vector.load %arg8[%c8_18, %c0_19] : memref<48x128xf32, #tpu.memory_space<vmem>>, vector<32x128xf32>
    %c3 = arith.constant 3 : index
    %c0_20 = arith.constant 0 : index
    %33 = vector.load %arg5[%c3, %c0_20] : memref<16x128xf32, #tpu.memory_space<vmem>>, vector<1x128xf32>
    %34 = vector.broadcast %33 : vector<1x128xf32> to vector<32x128xf32>
    %35 = arith.mulf %32, %34 : vector<32x128xf32>
    %36 = arith.addf %31, %35 : vector<32x128xf32>
    %c9 = arith.constant 9 : index
    %c0_21 = arith.constant 0 : index
    %37 = vector.load %arg8[%c9, %c0_21] : memref<48x128xf32, #tpu.memory_space<vmem>>, vector<32x128xf32>
    %c4 = arith.constant 4 : index
    %c0_22 = arith.constant 0 : index
    %38 = vector.load %arg5[%c4, %c0_22] : memref<16x128xf32, #tpu.memory_space<vmem>>, vector<1x128xf32>
    %39 = vector.broadcast %38 : vector<1x128xf32> to vector<32x128xf32>
    %40 = arith.mulf %37, %39 : vector<32x128xf32>
    %41 = arith.addf %36, %40 : vector<32x128xf32>
    %c10 = arith.constant 10 : index
    %c0_23 = arith.constant 0 : index
    %42 = vector.load %arg8[%c10, %c0_23] : memref<48x128xf32, #tpu.memory_space<vmem>>, vector<32x128xf32>
    %c5_24 = arith.constant 5 : index
    %c0_25 = arith.constant 0 : index
    %43 = vector.load %arg5[%c5_24, %c0_25] : memref<16x128xf32, #tpu.memory_space<vmem>>, vector<1x128xf32>
    %44 = vector.broadcast %43 : vector<1x128xf32> to vector<32x128xf32>
    %45 = arith.mulf %42, %44 : vector<32x128xf32>
    %46 = arith.addf %41, %45 : vector<32x128xf32>
    %c11 = arith.constant 11 : index
    %c0_26 = arith.constant 0 : index
    %47 = vector.load %arg8[%c11, %c0_26] : memref<48x128xf32, #tpu.memory_space<vmem>>, vector<32x128xf32>
    %c6_27 = arith.constant 6 : index
    %c0_28 = arith.constant 0 : index
    %48 = vector.load %arg5[%c6_27, %c0_28] : memref<16x128xf32, #tpu.memory_space<vmem>>, vector<1x128xf32>
    %49 = vector.broadcast %48 : vector<1x128xf32> to vector<32x128xf32>
    %50 = arith.mulf %47, %49 : vector<32x128xf32>
    %51 = arith.addf %46, %50 : vector<32x128xf32>
    %cst = arith.constant dense<0.000000e+00> : vector<32xf32>
    %52 = vector.multi_reduction <add>, %51, %cst [1] : vector<32x128xf32> to vector<32xf32>
    %53 = vector.shape_cast %52 : vector<32xf32> to vector<32x1xf32>
    %54 = arith.mulf %51, %51 : vector<32x128xf32>
    %cst_29 = arith.constant dense<0.000000e+00> : vector<32xf32>
    %55 = vector.multi_reduction <add>, %54, %cst_29 [1] : vector<32x128xf32> to vector<32xf32>
    %56 = vector.shape_cast %55 : vector<32xf32> to vector<32x1xf32>
    %cst_30 = arith.constant 3.125000e-02 : f32
    %57 = vector.broadcast %cst_30 : f32 to vector<32x1xf32>
    %58 = arith.mulf %53, %57 : vector<32x1xf32>
    %cst_31 = arith.constant 3.125000e-02 : f32
    %59 = vector.broadcast %cst_31 : f32 to vector<32x1xf32>
    %60 = arith.mulf %56, %59 : vector<32x1xf32>
    %61 = arith.mulf %58, %58 : vector<32x1xf32>
    %62 = arith.subf %60, %61 : vector<32x1xf32>
    %cst_32 = arith.constant 0.000000e+00 : f32
    %63 = vector.broadcast %cst_32 : f32 to vector<32x1xf32>
    %64 = arith.maximumf %62, %63 : vector<32x1xf32>
    %65 = vector.broadcast %58 : vector<32x1xf32> to vector<32x128xf32>
    %66 = arith.subf %51, %65 : vector<32x128xf32>
    %cst_33 = arith.constant 9.99999974E-6 : f32
    %67 = vector.broadcast %cst_33 : f32 to vector<32x1xf32>
    %68 = arith.addf %64, %67 : vector<32x1xf32>
    %69 = math.rsqrt %68 : vector<32x1xf32>
    %70 = vector.broadcast %69 : vector<32x1xf32> to vector<32x128xf32>
    %71 = arith.mulf %66, %70 : vector<32x128xf32>
    %c8_34 = arith.constant 8 : index
    %c0_35 = arith.constant 0 : index
    %72 = vector.load %arg5[%c8_34, %c0_35] : memref<16x128xf32, #tpu.memory_space<vmem>>, vector<1x128xf32>
    %73 = vector.broadcast %72 : vector<1x128xf32> to vector<32x128xf32>
    %74 = arith.mulf %71, %73 : vector<32x128xf32>
    %c9_36 = arith.constant 9 : index
    %c0_37 = arith.constant 0 : index
    %75 = vector.load %arg5[%c9_36, %c0_37] : memref<16x128xf32, #tpu.memory_space<vmem>>, vector<1x128xf32>
    %76 = vector.broadcast %75 : vector<1x128xf32> to vector<32x128xf32>
    %77 = arith.addf %74, %76 : vector<32x128xf32>
    %cst_38 = arith.constant 5.000000e-01 : f32
    %78 = vector.broadcast %cst_38 : f32 to vector<32x128xf32>
    %79 = arith.mulf %78, %77 : vector<32x128xf32>
    %cst_39 = arith.constant 0.707106769 : f32
    %80 = vector.broadcast %cst_39 : f32 to vector<32x128xf32>
    %81 = arith.mulf %77, %80 : vector<32x128xf32>
    %82 = math.erf %81 : vector<32x128xf32>
    %cst_40 = arith.constant 1.000000e+00 : f32
    %83 = vector.broadcast %cst_40 : f32 to vector<32x128xf32>
    %84 = arith.addf %83, %82 : vector<32x128xf32>
    %85 = arith.mulf %79, %84 : vector<32x128xf32>
    %86 = arith.truncf %85 : vector<32x128xf32> to vector<32x128xbf16>
    %c0_41 = arith.constant 0 : index
    %c0_42 = arith.constant 0 : index
    %87 = vector.load %arg6[%c0_41, %c0_42] : memref<128x128xbf16, #tpu.memory_space<vmem>>, vector<128x128xbf16>
    %cst_43 = arith.constant dense<0.000000e+00> : vector<32x128xf32>
    %88 = tpu.matmul %86, %87, %cst_43 {dimension_numbers = #tpu.dot_dimension_numbers<[1], [0], [0], [1], [0, 0, 1, 1], [], []>} : vector<32x128xbf16>, vector<128x128xbf16>, vector<32x128xf32> -> vector<32x128xf32>
    %c10_44 = arith.constant 10 : index
    %c0_45 = arith.constant 0 : index
    %89 = vector.load %arg5[%c10_44, %c0_45] : memref<16x128xf32, #tpu.memory_space<vmem>>, vector<1x128xf32>
    %90 = vector.broadcast %89 : vector<1x128xf32> to vector<32x128xf32>
    %91 = arith.addf %88, %90 : vector<32x128xf32>
    %92 = arith.addf %91, %1 : vector<32x128xf32>
    %c0_46 = arith.constant 0 : index
    %c0_47 = arith.constant 0 : index
    %c0_48 = arith.constant 0 : index
    %93 = vector.load %arg7[%c0_46, %c0_47, %c0_48] : memref<1x32x128xf32, #tpu.memory_space<vmem>>, vector<1x32x128xf32>
    %94 = vector.shape_cast %93 : vector<1x32x128xf32> to vector<32x128xf32>
    %95 = vector.shape_cast %92 : vector<32x128xf32> to vector<1x32x128xf32>
    tpu.vector_store %arg7[%c0_46, %c0_47, %c0_48], %95 {strides = array<i32>} : memref<1x32x128xf32, #tpu.memory_space<vmem>>, vector<1x32x128xf32>,
    return
  }
  func.func @transform_0(%arg0: i32, %arg1: i32) -> (i32, i32, i32) {
    %c0_i32 = arith.constant 0 : i32
    %c0_i32_0 = arith.constant 0 : i32
    return %arg0, %arg1, %c0_i32 : i32, i32, i32
  }
  func.func @transform_1(%arg0: i32, %arg1: i32) -> (i32, i32, i32) {
    %c4_i32 = arith.constant 4 : i32
    %0 = arith.muli %arg1, %c4_i32 : i32
    %c1_i32 = arith.constant 1 : i32
    %1 = arith.subi %0, %c1_i32 : i32
    %c0_i32 = arith.constant 0 : i32
    %2 = arith.maxsi %1, %c0_i32 : i32
    %c0_i32_0 = arith.constant 0 : i32
    %c0_i32_1 = arith.constant 0 : i32
    return %arg0, %2, %c0_i32_0 : i32, i32, i32
  }
  func.func @transform_2(%arg0: i32, %arg1: i32) -> (i32, i32, i32) {
    %c1_i32 = arith.constant 1 : i32
    %0 = arith.addi %arg1, %c1_i32 : i32
    %c4_i32 = arith.constant 4 : i32
    %1 = arith.muli %0, %c4_i32 : i32
    %c11_i32 = arith.constant 11 : i32
    %2 = arith.minsi %1, %c11_i32 : i32
    %c0_i32 = arith.constant 0 : i32
    %c0_i32_0 = arith.constant 0 : i32
    return %arg0, %2, %c0_i32 : i32, i32, i32
  }
  func.func @transform_3(%arg0: i32, %arg1: i32) -> (i32, i32) {
    %c0_i32 = arith.constant 0 : i32
    %c0_i32_0 = arith.constant 0 : i32
    %c0_i32_1 = arith.constant 0 : i32
    return %c0_i32, %c0_i32_0 : i32, i32
  }
  func.func @transform_4(%arg0: i32, %arg1: i32) -> (i32, i32) {
    %c0_i32 = arith.constant 0 : i32
    %c0_i32_0 = arith.constant 0 : i32
    %c0_i32_1 = arith.constant 0 : i32
    return %c0_i32, %c0_i32_0 : i32, i32
  }
  func.func @transform_5(%arg0: i32, %arg1: i32) -> (i32, i32, i32) {
    %c0_i32 = arith.constant 0 : i32
    %c0_i32_0 = arith.constant 0 : i32
    return %arg0, %arg1, %c0_i32 : i32, i32, i32
  }
}

</mosaic_0001>

<llo_original>
// kernel: tpu_custom_call.1
$region0: #{tpu_custom_call.1}
  #allocation0 [shape = 'u32[]', space=smem, size = 0x4, offset = 0x4, fixed_abs, tag = 'smem constant byte address 0x4 - core index']
  #allocation1 [shape = 'u32[144,128]{1,0:T(1,128)}', space=vmem, size = 0x12000, scoped, tag = 'internal scratch']
  #allocation2 [shape = 'f32[48,128]{1,0:T(8,128)}', space=vmem, size = 0x6000, scoped, tag = 'scratch operand']
  %s0 = inlined_call_operand.hbm [shape: f32[2,96,128], index: 0, kind: input, shape index: {}]
  %s1 = inlined_call_operand.hbm [shape: f32[2,96,128], index: 1, kind: input, shape index: {}]
  %s2 = inlined_call_operand.hbm [shape: f32[2,96,128], index: 2, kind: input, shape index: {}]
  %s3 = inlined_call_operand.hbm [shape: f32[16,128], index: 3, kind: input, shape index: {}]
  %s4 = inlined_call_operand.hbm [shape: bf16[128,128], index: 4, kind: input, shape index: {}]
  %s5 = inlined_call_operand.hbm [shape: f32[2,96,128], index: 5, kind: output, shape index: {}]
  %s6 = sld [smem:[#allocation0]]
  $region89: #{tpu_custom_call.1} parent=0
    _
  %s8 = ssub.s32 1, %s6
  %s9 = scalar_select 0, %s8, %s6
  $region1: #{tpu_custom_call.1} parent=0
    #allocation3 [shape = 'u8[32768]{0}', space=vmem, size = 0x8000, scoped, tag = 'input window, operand 0']
    #allocation4 [shape = 's32[2]{0}', space=sflag, size = 0x8, scoped, tag = 'scoped memory for tpu_custom_call.1']
    #allocation5 [shape = 's32[2]{0}', space=sflag, size = 0x8, scoped, tag = 'scoped memory for tpu_custom_call.1']
    #allocation6 [shape = 'u8[8192]{0}', space=vmem, size = 0x2000, scoped, tag = 'input window, operand 1']
    #allocation7 [shape = 's32[2]{0}', space=sflag, size = 0x8, scoped, tag = 'scoped memory for tpu_custom_call.1']
    #allocation8 [shape = 'u8[8192]{0}', space=vmem, size = 0x2000, scoped, tag = 'input window, operand 2']
    #allocation9 [shape = 'u8[8192]{0}', space=vmem, size = 0x2000, scoped, tag = 'input window, operand 3, single buffered']
    #allocation10 [shape = 's32[1]{0}', space=sflag, size = 0x4, scoped, tag = 'scoped memory for tpu_custom_call.1']
    #allocation11 [shape = 'u8[32768]{0}', space=vmem, size = 0x8000, scoped, tag = 'input window, operand 4, single buffered']
    #allocation12 [shape = 'u8[32768]{0}', space=vmem, size = 0x8000, scoped, tag = 'output window, operand 0']
    %10 = vsyncpa [#allocation4], 0
    %s11 = scalar_lea.sflag [#allocation4], 1
    %12 = vsyncpa %s11, 0
    %13 = vsyncpa [#allocation7], 0
    %s14 = scalar_lea.sflag [#allocation7], 1
    %15 = vsyncpa %s14, 0
    %16 = vsyncpa [#allocation10], 0
    %17 = vsyncpa [#allocation5], 0
    %s18 = scalar_lea.sflag [#allocation5], 1
    %19 = vsyncpa %s18, 0
    loop: start=0, step=1, limit=8
    $region2: #{tpu_custom_call.1} parent=1 // loop_pre_header
      _
    $region3: #{tpu_custom_call.1} parent=1 // loop_header
      %s21 = sphi 0, %s25
      %p22 = scmp.ge.s32.totalorder %s21, 8
      %s28 = sphi 0, %s40
      %s29 = sphi 0, %s36
      %s30 = sphi 0, %s28
      %s31 = sphi 0, %s29
      %s32 = sphi 0, %s30
      %s33 = sphi 0, %s31
      %s45 = sphi 0, %s47
      %s48 = sphi 0, %s45
      %s49 = sphi 0, %s48
      %s65 = sphi 0, %s49
      %s81 = sphi 0, %s83
      %s84 = sphi 0, %s81
      %s85 = sphi 0, %s84
      %s101 = sphi 0, %s85
      %s117 = sphi 0, %s119
      %s120 = sphi 0, %s117
      %s121 = sphi 0, %s120
      %s137 = sphi 0, %s121
      %s141 = sphi 0, %s141
      %s143 = sphi 0, %s141
      %s144 = sphi 0, %s143
      %s158 = sphi 0, %s144
      %s162 = sphi 0, %s162
      %s164 = sphi 0, %s162
      %s165 = sphi 0, %s164
      %s179 = sphi 0, %s165
      %s187 = sphi 0, %s189
      %s190 = sphi 0, %s187
      %s191 = sphi 0, %s190
      %s207 = sphi 0, %s191
    $region4: #{tpu_custom_call.1} parent=1 // loop_header_branch
      %24 = sbr.rel (%p22) target = $region8
    $region5: #{tpu_custom_call.1} parent=1 // loop_body
      %s26 = ssub.s32 %s21, 1
      %s27 = ssub.s32 %s21, 2
      %s34 = sadd.s32 1, %s29
      %p35 = scmp.ge.s32.totalorder %s34, 3
      %s36 = scalar_select %p35, 0, %s34
      %s37 = sadd.s32 1, %s28
      %s38 = scalar_select %p35, %s37, %s28
      %p39 = scmp.ge.s32.totalorder %s38, 2
      %s40 = scalar_select %p39, 0, %s38
      %s41 = ssub.s32 %s28, %s40
      %s42 = ssub.s32 %s29, %s36
      %s43 = sor.u32 %s41, %s42
      %p44 = scmp.eq.s32.totalorder %s43, 0
      %s46 = sadd.s32 %s45, 1
      %s47 = scalar_select %p44, %s45, %s46
      %p50 = pneg %p44
      %p51 = scmp.eq.s32.totalorder %s21, 5
      %p52 = por %p50, %p51
      %p53 = scmp.ne.s32.totalorder %s45, %s48
      %p54 = scmp.eq.s32.totalorder %s21, 0
      %p55 = por %p53, %p54
      %p56 = scmp.ne.s32.totalorder %s45, %s48
      %p57 = scmp.eq.s32.totalorder %s26, 5
      %p58 = por %p56, %p57
      %p59 = scmp.ne.s32.totalorder %s48, %s49
      %p60 = scmp.eq.s32.totalorder %s26, 0
      %p61 = por %p59, %p60
      %p62 = scmp.ne.s32.totalorder %s48, %s49
      %p63 = scmp.eq.s32.totalorder %s27, 5
      %p64 = por %p62, %p63
      %p66 = scmp.ne.s32.totalorder %s49, %s65
      %p67 = scmp.eq.s32.totalorder %s27, 0
      %p68 = por %p66, %p67
      %s69 = smul.u32 %s29, 4
      %s70 = ssub.s32 %s69, 1
      %p71 = scmp.gt.s32.totalorder %s70, 0
      %s72 = scalar_select %p71, %s70, 0
      %s73 = smul.u32 %s36, 4
      %s74 = ssub.s32 %s73, 1
      %p75 = scmp.gt.s32.totalorder %s74, 0
      %s76 = scalar_select %p75, %s74, 0
      %s77 = ssub.s32 %s28, %s40
      %s78 = ssub.s32 %s72, %s76
      %s79 = sor.u32 %s77, %s78
      %p80 = scmp.eq.s32.totalorder %s79, 0
      %s82 = sadd.s32 %s81, 1
      %s83 = scalar_select %p80, %s81, %s82
      %p86 = pneg %p80
      %p87 = scmp.eq.s32.totalorder %s21, 5
      %p88 = por %p86, %p87
      %p89 = scmp.ne.s32.totalorder %s81, %s84
      %p90 = scmp.eq.s32.totalorder %s21, 0
      %p91 = por %p89, %p90
      %p92 = scmp.ne.s32.totalorder %s81, %s84
      %p93 = scmp.eq.s32.totalorder %s26, 5
      %p94 = por %p92, %p93
      %p95 = scmp.ne.s32.totalorder %s84, %s85
      %p96 = scmp.eq.s32.totalorder %s26, 0
      %p97 = por %p95, %p96
      %p98 = scmp.ne.s32.totalorder %s84, %s85
      %p99 = scmp.eq.s32.totalorder %s27, 5
      %p100 = por %p98, %p99
      %p102 = scmp.ne.s32.totalorder %s85, %s101
      %p103 = scmp.eq.s32.totalorder %s27, 0
      %p104 = por %p102, %p103
      %s105 = sadd.s32 %s29, 1
      %s106 = smul.u32 %s105, 4
      %p107 = scmp.lt.s32.totalorder %s106, 11
      %s108 = scalar_select %p107, %s106, 11
      %s109 = sadd.s32 %s36, 1
      %s110 = smul.u32 %s109, 4
      %p111 = scmp.lt.s32.totalorder %s110, 11
      %s112 = scalar_select %p111, %s110, 11
      %s113 = ssub.s32 %s28, %s40
      %s114 = ssub.s32 %s108, %s112
      %s115 = sor.u32 %s113, %s114
      %p116 = scmp.eq.s32.totalorder %s115, 0
      %s118 = sadd.s32 %s117, 1
      %s119 = scalar_select %p116, %s117, %s118
      %p122 = pneg %p116
      %p123 = scmp.eq.s32.totalorder %s21, 5
      %p124 = por %p122, %p123
      %p125 = scmp.ne.s32.totalorder %s117, %s120
      %p126 = scmp.eq.s32.totalorder %s21, 0
      %p127 = por %p125, %p126
      %p128 = scmp.ne.s32.totalorder %s117, %s120
      %p129 = scmp.eq.s32.totalorder %s26, 5
      %p130 = por %p128, %p129
      %p131 = scmp.ne.s32.totalorder %s120, %s121
      %p132 = scmp.eq.s32.totalorder %s26, 0
      %p133 = por %p131, %p132
      %p134 = scmp.ne.s32.totalorder %s120, %s121
      %p135 = scmp.eq.s32.totalorder %s27, 5
      %p136 = por %p134, %p135
      %p138 = scmp.ne.s32.totalorder %s121, %s137
      %p139 = scmp.eq.s32.totalorder %s27, 0
      %p140 = por %p138, %p139
      %s142 = sadd.s32 %s141, 1
      %p145 = scmp.eq.s32.totalorder %s21, 5
      %p146 = scmp.ne.s32.totalorder %s141, %s143
      %p147 = scmp.eq.s32.totalorder %s21, 0
      %p148 = por %p146, %p147
      %p149 = scmp.ne.s32.totalorder %s141, %s143
      %p150 = scmp.eq.s32.totalorder %s26, 5
      %p151 = por %p149, %p150
      %p152 = scmp.ne.s32.totalorder %s143, %s144
      %p153 = scmp.eq.s32.totalorder %s26, 0
      %p154 = por %p152, %p153
      %p155 = scmp.ne.s32.totalorder %s143, %s144
      %p156 = scmp.eq.s32.totalorder %s27, 5
      %p157 = por %p155, %p156
      %p159 = scmp.ne.s32.totalorder %s144, %s158
      %p160 = scmp.eq.s32.totalorder %s27, 0
      %p161 = por %p159, %p160
      %s163 = sadd.s32 %s162, 1
      %p166 = scmp.eq.s32.totalorder %s21, 5
      %p167 = scmp.ne.s32.totalorder %s162, %s164
      %p168 = scmp.eq.s32.totalorder %s21, 0
      %p169 = por %p167, %p168
      %p170 = scmp.ne.s32.totalorder %s162, %s164
      %p171 = scmp.eq.s32.totalorder %s26, 5
      %p172 = por %p170, %p171
      %p173 = scmp.ne.s32.totalorder %s164, %s165
      %p174 = scmp.eq.s32.totalorder %s26, 0
      %p175 = por %p173, %p174
      %p176 = scmp.ne.s32.totalorder %s164, %s165
      %p177 = scmp.eq.s32.totalorder %s27, 5
      %p178 = por %p176, %p177
      %p180 = scmp.ne.s32.totalorder %s165, %s179
      %p181 = scmp.eq.s32.totalorder %s27, 0
      %p182 = por %p180, %p181
      %s183 = ssub.s32 %s28, %s40
      %s184 = ssub.s32 %s29, %s36
      %s185 = sor.u32 %s183, %s184
      %p186 = scmp.eq.s32.totalorder %s185, 0
      %s188 = sadd.s32 %s187, 1
      %s189 = scalar_select %p186, %s187, %s188
      %p192 = pneg %p186
      %p193 = scmp.eq.s32.totalorder %s21, 5
      %p194 = por %p192, %p193
      %p195 = scmp.ne.s32.totalorder %s187, %s190
      %p196 = scmp.eq.s32.totalorder %s21, 0
      %p197 = por %p195, %p196
      %p198 = scmp.ne.s32.totalorder %s187, %s190
      %p199 = scmp.eq.s32.totalorder %s26, 5
      %p200 = por %p198, %p199
      %p201 = scmp.ne.s32.totalorder %s190, %s191
      %p202 = scmp.eq.s32.totalorder %s26, 0
      %p203 = por %p201, %p202
      %p204 = scmp.ne.s32.totalorder %s190, %s191
      %p205 = scmp.eq.s32.totalorder %s27, 5
      %p206 = por %p204, %p205
      %p208 = scmp.ne.s32.totalorder %s191, %s207
      %p209 = scmp.eq.s32.totalorder %s27, 0
      %p210 = por %p208, %p209
      %p211 = scmp.le.s32.totalorder 1, %s21
      %p212 = scmp.lt.s32.totalorder %s21, 7
      %p213 = pnand %p211, %p212
      %p214 = pneg %p213
      // Predicated region
      $region9: #{tpu_custom_call.1} parent=5 // pred_check
        _
      $region10: #{tpu_custom_call.1} parent=5 // pred_check_branch
        %216 = sbr.rel (%p213) target = $region12
      $region11: #{tpu_custom_call.1} parent=5 // pred_region
        %s217 = ssub.s32 %s21, 1
        // Predicated region
        $region13: #{tpu_custom_call.1} parent=11 // pred_check
          %p218 = pneg %p154
        $region14: #{tpu_custom_call.1} parent=11 // pred_check_branch
          %220 = sbr.rel (%p218) target = $region16
        $region15: #{tpu_custom_call.1} parent=11 // pred_region
          %s222 = ssub.s32 256, 256
          %223 = vsyncadd [#allocation10], %s222
          %s224 = sshll.u32 [#allocation9], 4
          %s225 = int_to_ptr.vmem [resolvable:$true] %s224
          %230 = dma.hbm_to_vmem [thread:$0]  %s3, 256, %s225, [#allocation10], 128, 128, 8
        $region16: #{tpu_custom_call.1} parent=11 // pred_fallthru
          _
        // Predicated region
        $region17: #{tpu_custom_call.1} parent=11 // pred_check
          %p231 = pneg %p175
        $region18: #{tpu_custom_call.1} parent=11 // pred_check_branch
          %233 = sbr.rel (%p231) target = $region20
        $region19: #{tpu_custom_call.1} parent=11 // pred_region
          %s235 = ssub.s32 1024, 1024
          %236 = vsyncadd [#allocation10], %s235
          %s237 = sshll.u32 [#allocation11], 4
          %s238 = int_to_ptr.vmem [resolvable:$true] %s237
          %243 = dma.hbm_to_vmem [thread:$0]  %s4, 1024, %s238, [#allocation10], 64, 64, 4
        $region20: #{tpu_custom_call.1} parent=11 // pred_fallthru
          _
      $region12: #{tpu_custom_call.1} parent=5 // pred_fallthru
        _
      %p244 = scmp.lt.s32.totalorder %s21, 6
      // Predicated region
      $region21: #{tpu_custom_call.1} parent=5 // pred_check
        %p245 = pneg %p244
      $region22: #{tpu_custom_call.1} parent=5 // pred_check_branch
        %247 = sbr.rel (%p245) target = $region24
      $region23: #{tpu_custom_call.1} parent=5 // pred_region
        // Predicated region
        $region25: #{tpu_custom_call.1} parent=23 // pred_check
          %p248 = pneg %p55
        $region26: #{tpu_custom_call.1} parent=23 // pred_check_branch
          %250 = sbr.rel (%p248) target = $region28
        $region27: #{tpu_custom_call.1} parent=23 // pred_region
          %s251 = sand.u32 %s45, 1
          %s252 = scalar_lea.sflag [#allocation4], %s251
          %s253 = sand.u32 %s45, 1
          %s254 = smul.addr %s253, 32
          %s255 = scalar_lea.vmem [#allocation3], %s254
          %s256 = smul.u32 4, %s29
          %s258 = ssub.s32 512, 512
          %259 = vsyncadd %s252, %s258
          %s260 = smul.addr %s28, 12
          %s261 = sadd.s32 %s256, %s260
          %s262 = smul.addr %s261, 128
          %s263 = scalar_lea.hbm %s0, %s262
          %s264 = sshll.u32 %s255, 4
          %s265 = int_to_ptr.vmem [resolvable:$true] %s264
          %270 = dma.hbm_to_vmem [thread:$0]  %s263, 512, %s265, %s252, 128, 128, 8
        $region28: #{tpu_custom_call.1} parent=23 // pred_fallthru
          _
        // Predicated region
        $region29: #{tpu_custom_call.1} parent=23 // pred_check
          %p271 = pneg %p91
        $region30: #{tpu_custom_call.1} parent=23 // pred_check_branch
          %273 = sbr.rel (%p271) target = $region32
        $region31: #{tpu_custom_call.1} parent=23 // pred_region
          %s274 = sand.u32 %s21, 1
          %s275 = scalar_lea.sflag [#allocation7], %s274
          %s276 = sand.u32 %s81, 1
          %s277 = smul.addr %s276, 8
          %s278 = scalar_lea.vmem [#allocation6], %s277
          %s279 = smul.u32 %s29, 4
          %s280 = ssub.s32 %s279, 1
          %p281 = scmp.gt.s32.totalorder %s280, 0
          %s282 = scalar_select %p281, %s280, 0
          %s284 = ssub.s32 128, 128
          %285 = vsyncadd %s275, %s284
          %s286 = smul.addr %s28, 12
          %s287 = sadd.s32 %s282, %s286
          %s288 = smul.addr %s287, 128
          %s289 = scalar_lea.hbm %s1, %s288
          %s291 = sshll.u32 %s278, 4
          %s292 = int_to_ptr.vmem [resolvable:$true] %s291
          %294 = dma.hbm_to_vmem [thread:$0]  %s289, 128, %s292, %s275
        $region32: #{tpu_custom_call.1} parent=23 // pred_fallthru
          _
        // Predicated region
        $region33: #{tpu_custom_call.1} parent=23 // pred_check
          %p295 = pneg %p127
        $region34: #{tpu_custom_call.1} parent=23 // pred_check_branch
          %297 = sbr.rel (%p295) target = $region36
        $region35: #{tpu_custom_call.1} parent=23 // pred_region
          %s298 = sand.u32 %s21, 1
          %s299 = scalar_lea.sflag [#allocation7], %s298
          %s300 = sand.u32 %s117, 1
          %s301 = smul.addr %s300, 8
          %s302 = scalar_lea.vmem [#allocation8], %s301
          %s303 = sadd.s32 %s29, 1
          %s304 = smul.u32 %s303, 4
          %p305 = scmp.lt.s32.totalorder %s304, 11
          %s306 = scalar_select %p305, %s304, 11
          %s308 = ssub.s32 128, 128
          %309 = vsyncadd %s299, %s308
          %s310 = smul.addr %s28, 12
          %s311 = sadd.s32 %s306, %s310
          %s312 = smul.addr %s311, 128
          %s313 = scalar_lea.hbm %s2, %s312
          %s315 = sshll.u32 %s302, 4
          %s316 = int_to_ptr.vmem [resolvable:$true] %s315
          %318 = dma.hbm_to_vmem [thread:$0]  %s313, 128, %s316, %s299
        $region36: #{tpu_custom_call.1} parent=23 // pred_fallthru
          _
      $region24: #{tpu_custom_call.1} parent=5 // pred_fallthru
        _
      %p319 = scmp.le.s32.totalorder 1, %s21
      %p320 = scmp.lt.s32.totalorder %s21, 7
      %p321 = pnand %p319, %p320
      %p322 = pneg %p321
      // Predicated region
      $region37: #{tpu_custom_call.1} parent=5 // pred_check
        _
      $region38: #{tpu_custom_call.1} parent=5 // pred_check_branch
        %324 = sbr.rel (%p321) target = $region40
      $region39: #{tpu_custom_call.1} parent=5 // pred_region
        %s325 = ssub.s32 %s21, 1
        %s326 = sand.u32 %s48, 1
        %s327 = scalar_lea.sflag [#allocation4], %s326
        %s328 = sand.u32 %s48, 1
        %s329 = smul.addr %s328, 32
        %s330 = scalar_lea.vmem [#allocation3], %s329
        // Predicated region
        $region41: #{tpu_custom_call.1} parent=39 // pred_check
          %p331 = pneg %p61
        $region42: #{tpu_custom_call.1} parent=39 // pred_check_branch
          %333 = sbr.rel (%p331) target = $region44
        $region43: #{tpu_custom_call.1} parent=39 // pred_region
          %334 = dma.done %s327, 512
        $region44: #{tpu_custom_call.1} parent=39 // pred_fallthru
          _
        %s335 = sand.u32 %s26, 1
        %s336 = scalar_lea.sflag [#allocation7], %s335
        %s337 = sand.u32 %s84, 1
        %s338 = smul.addr %s337, 8
        %s339 = scalar_lea.vmem [#allocation6], %s338
        // Predicated region
        $region45: #{tpu_custom_call.1} parent=39 // pred_check
          %p340 = pneg %p97
        $region46: #{tpu_custom_call.1} parent=39 // pred_check_branch
          %342 = sbr.rel (%p340) target = $region48
        $region47: #{tpu_custom_call.1} parent=39 // pred_region
          %343 = dma.done %s336, 128
        $region48: #{tpu_custom_call.1} parent=39 // pred_fallthru
          _
        %s344 = sand.u32 %s26, 1
        %s345 = scalar_lea.sflag [#allocation7], %s344
        %s346 = sand.u32 %s120, 1
        %s347 = smul.addr %s346, 8
        %s348 = scalar_lea.vmem [#allocation8], %s347
        // Predicated region
        $region49: #{tpu_custom_call.1} parent=39 // pred_check
          %p349 = pneg %p133
        $region50: #{tpu_custom_call.1} parent=39 // pred_check_branch
          %351 = sbr.rel (%p349) target = $region52
        $region51: #{tpu_custom_call.1} parent=39 // pred_region
          %352 = dma.done %s345, 128
        $region52: #{tpu_custom_call.1} parent=39 // pred_fallthru
          _
        // Predicated region
        $region53: #{tpu_custom_call.1} parent=39 // pred_check
          %p353 = pneg %p154
        $region54: #{tpu_custom_call.1} parent=39 // pred_check_branch
          %355 = sbr.rel (%p353) target = $region56
        $region55: #{tpu_custom_call.1} parent=39 // pred_region
          %356 = dma.done [#allocation10], 256
        $region56: #{tpu_custom_call.1} parent=39 // pred_fallthru
          _
        // Predicated region
        $region57: #{tpu_custom_call.1} parent=39 // pred_check
          %p357 = pneg %p175
        $region58: #{tpu_custom_call.1} parent=39 // pred_check_branch
          %359 = sbr.rel (%p357) target = $region60
        $region59: #{tpu_custom_call.1} parent=39 // pred_region
          %360 = dma.done [#allocation10], 1024
        $region60: #{tpu_custom_call.1} parent=39 // pred_fallthru
          _
        %s361 = sand.u32 %s48, 1
        %s362 = scalar_lea.sflag [#allocation4], %s361
        %s363 = sand.u32 %s48, 1
        %s364 = smul.addr %s363, 32
        %s365 = scalar_lea.vmem [#allocation3], %s364
        %p366 = pneg %p61
        %p367 = pneg %p58
        %s368 = sand.u32 %s26, 1
        %s369 = scalar_lea.sflag [#allocation7], %s368
        %s370 = sand.u32 %s84, 1
        %s371 = smul.addr %s370, 8
        %s372 = scalar_lea.vmem [#allocation6], %s371
        %p373 = pneg %p97
        %p374 = pneg %p94
        %s375 = sand.u32 %s26, 1
        %s376 = scalar_lea.sflag [#allocation7], %s375
        %s377 = sand.u32 %s120, 1
        %s378 = smul.addr %s377, 8
        %s379 = scalar_lea.vmem [#allocation8], %s378
        %p380 = pneg %p133
        %p381 = pneg %p130
        %p382 = pneg %p154
        %p383 = pneg %p151
        %p384 = pneg %p175
        %p385 = pneg %p172
        %p386 = pneg %p203
        %p387 = pneg %p200
        %s388 = sand.u32 %s190, 1
        %s389 = scalar_lea.sflag [#allocation5], %s388
        %s390 = sand.u32 %s190, 1
        %s391 = smul.addr %s390, 32
        %s392 = scalar_lea.vmem [#allocation12], %s391
        %s393 = smul.u32 4, %s31
        %s394 = smul.u32 %s31, 4
        %s395 = ssub.s32 %s394, 1
        %p396 = scmp.gt.s32.totalorder %s395, 0
        %s397 = scalar_select %p396, %s395, 0
        %s398 = sadd.s32 %s31, 1
        %s399 = smul.u32 %s398, 4
        %p400 = scmp.lt.s32.totalorder %s399, 11
        %s401 = scalar_select %p400, %s399, 11
        %s402 = smul.u32 4, %s31
        %v404 = vld [vmem:[%s330] sm:$0xff]
        %v405 = vld [vmem:[%s330 + $0x8] sm:$0xff]
        %v406 = vld [vmem:[%s330 + $0x10] sm:$0xff]
        %v407 = vld [vmem:[%s330 + $0x18] sm:$0xff]
        %408 = vst [vmem:[#allocation2 + $0x8] sm:$0xff] %v404
        %409 = vst [vmem:[#allocation2 + $0x10] sm:$0xff] %v405
        %410 = vst [vmem:[#allocation2 + $0x18] sm:$0xff] %v406
        %411 = vst [vmem:[#allocation2 + $0x20] sm:$0xff] %v407
        %p412 = scmp.gt.s32.totalorder %s31, 0
        // Predicated region
        $region61: #{tpu_custom_call.1} parent=39 // pred_check
          %p413 = pneg %p412
        $region62: #{tpu_custom_call.1} parent=39 // pred_check_branch
          %415 = sbr.rel (%p413) target = $region64
        $region63: #{tpu_custom_call.1} parent=39 // pred_region
          %v416 = vld [vmem:[%s339] sm:$0xff]
          %417 = vst [vmem:[#allocation2] sm:$0xff] %v416
        $region64: #{tpu_custom_call.1} parent=39 // pred_fallthru
          _
        %p418 = scmp.eq.s32.totalorder %s31, 0
        // Predicated region
        $region65: #{tpu_custom_call.1} parent=39 // pred_check
          %p419 = pneg %p418
        $region66: #{tpu_custom_call.1} parent=39 // pred_check_branch
          %421 = sbr.rel (%p419) target = $region68
        $region67: #{tpu_custom_call.1} parent=39 // pred_region
          %422 = vst [vmem:[#allocation2] sm:$0xff] 0.0
        $region68: #{tpu_custom_call.1} parent=39 // pred_fallthru
          _
        %p423 = scmp.lt.s32.totalorder %s31, 2
        // Predicated region
        $region69: #{tpu_custom_call.1} parent=39 // pred_check
          %p424 = pneg %p423
        $region70: #{tpu_custom_call.1} parent=39 // pred_check_branch
          %426 = sbr.rel (%p424) target = $region72
        $region71: #{tpu_custom_call.1} parent=39 // pred_region
          %v427 = vld [vmem:[%s348] sm:$0xff]
          %428 = vst [vmem:[#allocation2 + $0x28] sm:$0xff] %v427
        $region72: #{tpu_custom_call.1} parent=39 // pred_fallthru
          _
        %p429 = scmp.eq.s32.totalorder %s31, 2
        // Predicated region
        $region73: #{tpu_custom_call.1} parent=39 // pred_check
          %p430 = pneg %p429
        $region74: #{tpu_custom_call.1} parent=39 // pred_check_branch
          %432 = sbr.rel (%p430) target = $region76
        $region75: #{tpu_custom_call.1} parent=39 // pred_region
          %433 = vst [vmem:[#allocation2 + $0x28] sm:$0xff] 0.0
        $region76: #{tpu_custom_call.1} parent=39 // pred_fallthru
          _
        %v434 = vld [vmem:[#allocation2 + $0x5] sm:$0xff]
        %v435 = vld [vmem:[#allocation2 + $0xd] sm:$0xff]
        %v436 = vld [vmem:[#allocation2 + $0x15] sm:$0xff]
        %v437 = vld [vmem:[#allocation2 + $0x1d] sm:$0xff]
        %v438 = vld [vmem:[#allocation9] sm:$0x1]
        %v439 = vlaneseq
        %v440 = vshrl.u32 %v439, 7
        %v441 = vsub.s32 0, %v440
        %v442 = vrot.slane %v438, %v441
        %v443 = vmul.f32 %v434, %v442
        %v444 = vmul.f32 %v435, %v442
        %v445 = vmul.f32 %v436, %v442
        %v446 = vmul.f32 %v437, %v442
        %v447 = vld [vmem:[#allocation9 + $0x7] sm:$0x1]
        %v448 = vlaneseq
        %v449 = vshrl.u32 %v448, 7
        %v450 = vsub.s32 0, %v449
        %v451 = vrot.slane %v447, %v450
        %v452 = vadd.f32 %v443, %v451
        %v453 = vadd.f32 %v444, %v451
        %v454 = vadd.f32 %v445, %v451
        %v455 = vadd.f32 %v446, %v451
        %v456 = vld [vmem:[#allocation2 + $0x6] sm:$0xff]
        %v457 = vld [vmem:[#allocation2 + $0xe] sm:$0xff]
        %v458 = vld [vmem:[#allocation2 + $0x16] sm:$0xff]
        %v459 = vld [vmem:[#allocation2 + $0x1e] sm:$0xff]
        %v460 = vld [vmem:[#allocation9 + $0x1] sm:$0x1]
        %v461 = vlaneseq
        %v462 = vshrl.u32 %v461, 7
        %v463 = vsub.s32 0, %v462
        %v464 = vrot.slane %v460, %v463
        %v465 = vmul.f32 %v456, %v464
        %v466 = vmul.f32 %v457, %v464
        %v467 = vmul.f32 %v458, %v464
        %v468 = vmul.f32 %v459, %v464
        %v469 = vadd.f32 %v452, %v465
        %v470 = vadd.f32 %v453, %v466
        %v471 = vadd.f32 %v454, %v467
        %v472 = vadd.f32 %v455, %v468
        %v473 = vld [vmem:[#allocation2 + $0x7] sm:$0xff]
        %v474 = vld [vmem:[#allocation2 + $0xf] sm:$0xff]
        %v475 = vld [vmem:[#allocation2 + $0x17] sm:$0xff]
        %v476 = vld [vmem:[#allocation2 + $0x1f] sm:$0xff]
        %v477 = vld [vmem:[#allocation9 + $0x2] sm:$0x1]
        %v478 = vlaneseq
        %v479 = vshrl.u32 %v478, 7
        %v480 = vsub.s32 0, %v479
        %v481 = vrot.slane %v477, %v480
        %v482 = vmul.f32 %v473, %v481
        %v483 = vmul.f32 %v474, %v481
        %v484 = vmul.f32 %v475, %v481
        %v485 = vmul.f32 %v476, %v481
        %v486 = vadd.f32 %v469, %v482
        %v487 = vadd.f32 %v470, %v483
        %v488 = vadd.f32 %v471, %v484
        %v489 = vadd.f32 %v472, %v485
        %v490 = vld [vmem:[#allocation2 + $0x8] sm:$0xff]
        %v491 = vld [vmem:[#allocation2 + $0x10] sm:$0xff]
        %v492 = vld [vmem:[#allocation2 + $0x18] sm:$0xff]
        %v493 = vld [vmem:[#allocation2 + $0x20] sm:$0xff]
        %v494 = vld [vmem:[#allocation9 + $0x3] sm:$0x1]
        %v495 = vlaneseq
        %v496 = vshrl.u32 %v495, 7
        %v497 = vsub.s32 0, %v496
        %v498 = vrot.slane %v494, %v497
        %v499 = vmul.f32 %v490, %v498
        %v500 = vmul.f32 %v491, %v498
        %v501 = vmul.f32 %v492, %v498
        %v502 = vmul.f32 %v493, %v498
        %v503 = vadd.f32 %v486, %v499
        %v504 = vadd.f32 %v487, %v500
        %v505 = vadd.f32 %v488, %v501
        %v506 = vadd.f32 %v489, %v502
        %v507 = vld [vmem:[#allocation2 + $0x9] sm:$0xff]
        %v508 = vld [vmem:[#allocation2 + $0x11] sm:$0xff]
        %v509 = vld [vmem:[#allocation2 + $0x19] sm:$0xff]
        %v510 = vld [vmem:[#allocation2 + $0x21] sm:$0xff]
        %v511 = vld [vmem:[#allocation9 + $0x4] sm:$0x1]
        %v512 = vlaneseq
        %v513 = vshrl.u32 %v512, 7
        %v514 = vsub.s32 0, %v513
        %v515 = vrot.slane %v511, %v514
        %v516 = vmul.f32 %v507, %v515
        %v517 = vmul.f32 %v508, %v515
        %v518 = vmul.f32 %v509, %v515
        %v519 = vmul.f32 %v510, %v515
        %v520 = vadd.f32 %v503, %v516
        %v521 = vadd.f32 %v504, %v517
        %v522 = vadd.f32 %v505, %v518
        %v523 = vadd.f32 %v506, %v519
        %v524 = vld [vmem:[#allocation2 + $0xa] sm:$0xff]
        %v525 = vld [vmem:[#allocation2 + $0x12] sm:$0xff]
        %v526 = vld [vmem:[#allocation2 + $0x1a] sm:$0xff]
        %v527 = vld [vmem:[#allocation2 + $0x22] sm:$0xff]
        %v528 = vld [vmem:[#allocation9 + $0x5] sm:$0x1]
        %v529 = vlaneseq
        %v530 = vshrl.u32 %v529, 7
        %v531 = vsub.s32 0, %v530
        %v532 = vrot.slane %v528, %v531
        %v533 = vmul.f32 %v524, %v532
        %v534 = vmul.f32 %v525, %v532
        %v535 = vmul.f32 %v526, %v532
        %v536 = vmul.f32 %v527, %v532
        %v537 = vadd.f32 %v520, %v533
        %v538 = vadd.f32 %v521, %v534
        %v539 = vadd.f32 %v522, %v535
        %v540 = vadd.f32 %v523, %v536
        %v541 = vld [vmem:[#allocation2 + $0xb] sm:$0xff]
        %v542 = vld [vmem:[#allocation2 + $0x13] sm:$0xff]
        %v543 = vld [vmem:[#allocation2 + $0x1b] sm:$0xff]
        %v544 = vld [vmem:[#allocation2 + $0x23] sm:$0xff]
        %v545 = vld [vmem:[#allocation9 + $0x6] sm:$0x1]
        %v546 = vlaneseq
        %v547 = vshrl.u32 %v546, 7
        %v548 = vsub.s32 0, %v547
        %v549 = vrot.slane %v545, %v548
        %v550 = vmul.f32 %v541, %v549
        %v551 = vmul.f32 %v542, %v549
        %v552 = vmul.f32 %v543, %v549
        %v553 = vmul.f32 %v544, %v549
        %v554 = vadd.f32 %v537, %v550
        %v555 = vadd.f32 %v538, %v551
        %v556 = vadd.f32 %v539, %v552
        %v557 = vadd.f32 %v540, %v553
        %558 = vadd.xlane.f32.xlu0 %v554
        %v559 = vpop.xlane.xlu0 %558
        %560 = vadd.xlane.f32.xlu0 %v555
        %v561 = vpop.xlane.xlu0 %560
        %562 = vadd.xlane.f32.xlu0 %v556
        %v563 = vpop.xlane.xlu0 %562
        %564 = vadd.xlane.f32.xlu0 %v557
        %v565 = vpop.xlane.xlu0 %564
        %v566 = vmul.f32 %v554, %v554
        %v567 = vmul.f32 %v555, %v555
        %v568 = vmul.f32 %v556, %v556
        %v569 = vmul.f32 %v557, %v557
        %570 = vadd.xlane.f32.xlu0 %v566
        %v571 = vpop.xlane.xlu0 %570
        %572 = vadd.xlane.f32.xlu0 %v567
        %v573 = vpop.xlane.xlu0 %572
        %574 = vadd.xlane.f32.xlu0 %v568
        %v575 = vpop.xlane.xlu0 %574
        %576 = vadd.xlane.f32.xlu0 %v569
        %v577 = vpop.xlane.xlu0 %576
        %v578 = vmul.f32 %v559, 0.03125
        %v579 = vmul.f32 %v561, 0.03125
        %v580 = vmul.f32 %v563, 0.03125
        %v581 = vmul.f32 %v565, 0.03125
        %v582 = vmul.f32 %v571, 0.03125
        %v583 = vmul.f32 %v573, 0.03125
        %v584 = vmul.f32 %v575, 0.03125
        %v585 = vmul.f32 %v577, 0.03125
        %v586 = vmul.f32 %v578, %v578
        %v587 = vmul.f32 %v579, %v579
        %v588 = vmul.f32 %v580, %v580
        %v589 = vmul.f32 %v581, %v581
        %v590 = vsub.f32 %v582, %v586
        %v591 = vsub.f32 %v583, %v587
        %v592 = vsub.f32 %v584, %v588
        %v593 = vsub.f32 %v585, %v589
        %v594 = vmax.f32 %v590, 0.0
        %v595 = vmax.f32 %v591, 0.0
        %v596 = vmax.f32 %v592, 0.0
        %v597 = vmax.f32 %v593, 0.0
        %v598 = vsub.f32 %v554, %v578
        %v599 = vsub.f32 %v555, %v579
        %v600 = vsub.f32 %v556, %v580
        %v601 = vsub.f32 %v557, %v581
        %v602 = vadd.f32 %v594, 1e-05
        %v603 = vadd.f32 %v595, 1e-05
        %v604 = vadd.f32 %v596, 1e-05
        %v605 = vadd.f32 %v597, 1e-05
        %v606 = vrsqrt.pop %v602
        %v607 = vrsqrt.pop %v603
        %v608 = vrsqrt.pop %v604
        %v609 = vrsqrt.pop %v605
        %v610 = vmul.f32 %v598, %v606
        %v611 = vmul.f32 %v599, %v607
        %v612 = vmul.f32 %v600, %v608
        %v613 = vmul.f32 %v601, %v609
        %v614 = vld [vmem:[#allocation9 + $0x8] sm:$0x1]
        %v615 = vlaneseq
        %v616 = vshrl.u32 %v615, 7
        %v617 = vsub.s32 0, %v616
        %v618 = vrot.slane %v614, %v617
        %v619 = vmul.f32 %v610, %v618
        %v620 = vmul.f32 %v611, %v618
        %v621 = vmul.f32 %v612, %v618
        %v622 = vmul.f32 %v613, %v618
        %v623 = vld [vmem:[#allocation9 + $0x9] sm:$0x1]
        %v624 = vlaneseq
        %v625 = vshrl.u32 %v624, 7
        %v626 = vsub.s32 0, %v625
        %v627 = vrot.slane %v623, %v626
        %v628 = vadd.f32 %v619, %v627
        %v629 = vadd.f32 %v620, %v627
        %v630 = vadd.f32 %v621, %v627
        %v631 = vadd.f32 %v622, %v627
        %v632 = vmul.f32 %v628, 0.5
        %v633 = vmul.f32 %v629, 0.5
        %v634 = vmul.f32 %v630, 0.5
        %v635 = vmul.f32 %v631, 0.5
        %v636 = vmul.f32 %v628, 0.70710677
        %v637 = vmul.f32 %v629, 0.70710677
        %v638 = vmul.f32 %v630, 0.70710677
        %v639 = vmul.f32 %v631, 0.70710677
        %v640 = verf.f32.pop %v636
        %v641 = verf.f32.pop %v637
        %v642 = verf.f32.pop %v638
        %v643 = verf.f32.pop %v639
        %v644 = vadd.f32 %v640, 1.0
        %v645 = vadd.f32 %v641, 1.0
        %v646 = vadd.f32 %v642, 1.0
        %v647 = vadd.f32 %v643, 1.0
        %v648 = vmul.f32 %v632, %v644
        %v649 = vmul.f32 %v633, %v645
        %v650 = vmul.f32 %v634, %v646
        %v651 = vmul.f32 %v635, %v647
        %v652 = vpack.c.bf16 %v649, %v648
        %v653 = vpack.c.bf16 %v651, %v650
        %v654 = vld [vmem:[#allocation11] sm:$0xf]
        %v655 = vld [vmem:[#allocation11 + $0x4] sm:$0xf]
        %v656 = vld [vmem:[#allocation11 + $0x8] sm:$0xf]
        %v657 = vld [vmem:[#allocation11 + $0xc] sm:$0xf]
        %v658 = vld [vmem:[#allocation11 + $0x10] sm:$0xf]
        %v659 = vld [vmem:[#allocation11 + $0x14] sm:$0xf]
        %v660 = vld [vmem:[#allocation11 + $0x18] sm:$0xf]
        %v661 = vld [vmem:[#allocation11 + $0x1c] sm:$0xf]
        %v662 = vld [vmem:[#allocation11 + $0x20] sm:$0xf]
        %v663 = vld [vmem:[#allocation11 + $0x24] sm:$0xf]
        %v664 = vld [vmem:[#allocation11 + $0x28] sm:$0xf]
        %v665 = vld [vmem:[#allocation11 + $0x2c] sm:$0xf]
        %v666 = vld [vmem:[#allocation11 + $0x30] sm:$0xf]
        %v667 = vld [vmem:[#allocation11 + $0x34] sm:$0xf]
        %v668 = vld [vmem:[#allocation11 + $0x38] sm:$0xf]
        %v669 = vld [vmem:[#allocation11 + $0x3c] sm:$0xf]
        %v670 = vld [vmem:[#allocation9 + $0xa] sm:$0x1]
        %v671 = vlaneseq
        %v672 = vshrl.u32 %v671, 7
        %v673 = vsub.s32 0, %v672
        %v674 = vrot.slane %v670, %v673
        %v691 = vunpack.c.l.b16 %v654
        %v692 = vunpack.c.l.b16 %v655
        %v693 = vunpack.c.l.b16 %v656
        %v694 = vunpack.c.l.b16 %v657
        %v695 = vunpack.c.l.b16 %v658
        %v696 = vunpack.c.l.b16 %v659
        %v697 = vunpack.c.l.b16 %v660
        %v698 = vunpack.c.l.b16 %v661
        %v699 = vunpack.c.l.b16 %v662
        %v700 = vunpack.c.l.b16 %v663
        %v701 = vunpack.c.l.b16 %v664
        %v702 = vunpack.c.l.b16 %v665
        %v703 = vunpack.c.l.b16 %v666
        %v704 = vunpack.c.l.b16 %v667
        %v705 = vunpack.c.l.b16 %v668
        %v706 = vunpack.c.l.b16 %v669
        %v707 = vpack.c.b16 %v692, %v691
        %v708 = vpack.c.b16 %v694, %v693
        %v709 = vpack.c.b16 %v696, %v695
        %v710 = vpack.c.b16 %v698, %v697
        %v711 = vpack.c.b16 %v700, %v699
        %v712 = vpack.c.b16 %v702, %v701
        %v713 = vpack.c.b16 %v704, %v703
        %v714 = vpack.c.b16 %v706, %v705
        %723 = vmatprep.subr.bf16.mxu0 0
        %724 = vmatpush1.bf16.msra.mxu0 %v707
        %725 = vmatprep.subr.bf16.mxu0 0
        %726 = vmatpush1.bf16.msra.mxu0 %v708
        %727 = vmatprep.subr.bf16.mxu0 0
        %728 = vmatpush1.bf16.msra.mxu0 %v709
        %729 = vmatprep.subr.bf16.mxu0 0
        %730 = vmatpush1.bf16.msra.mxu0 %v710
        %731 = vmatprep.subr.bf16.mxu0 0
        %732 = vmatpush1.bf16.msra.mxu0 %v711
        %733 = vmatprep.subr.bf16.mxu0 0
        %734 = vmatpush1.bf16.msra.mxu0 %v712
        %735 = vmatprep.subr.bf16.mxu0 0
        %736 = vmatpush1.bf16.msra.mxu0 %v713
        %737 = vmatprep.subr.bf16.mxu0 0
        %738 = vmatpush1.bf16.msra.mxu0 %v714
        %739 = vmatprep.subr.bf16.mxu0 0
        %740 = vmatpush1.bf16.msra.mxu0 0
        %741 = vmatprep.subr.bf16.mxu0 0
        %742 = vmatpush1.bf16.msra.mxu0 0
        %743 = vmatprep.subr.bf16.mxu0 0
        %744 = vmatpush1.bf16.msra.mxu0 0
        %745 = vmatprep.subr.bf16.mxu0 0
        %746 = vmatpush1.bf16.msra.mxu0 0
        %747 = vmatprep.subr.bf16.mxu0 0
        %748 = vmatpush1.bf16.msra.mxu0 0
        %749 = vmatprep.subr.bf16.mxu0 0
        %750 = vmatpush1.bf16.msra.mxu0 0
        %751 = vmatprep.subr.bf16.mxu0 0
        %752 = vmatpush1.bf16.msra.mxu0 0
        %753 = vmatprep.subr.bf16.mxu0 0
        %754 = vmatpush1.bf16.msra.mxu0 0
        %755 = vmatprep.mubr.bf16.mxu0 0
        %756 = vmatmul.mubr.bf16.gmra.mrb[0].mxu0 %v652
        %v757 = vpop.f32.mrb[0].mxu0
        %v758 = vadd.f32 %v674, %v757
        %v759 = vpop.f32.mrb[0].mxu0
        %v760 = vpop.f32.mrb[0].mxu0
        %v761 = vadd.f32 %v674, %v760
        %v762 = vpop.f32.mrb[0].mxu0
        %763 = vmatprep.mubr.bf16.mxu0 0
        %764 = vmatmul.mubr.bf16.gmra.mrb[0].mxu0 %v653
        %v765 = vpop.f32.mrb[0].mxu0
        %v766 = vadd.f32 %v674, %v765
        %v767 = vpop.f32.mrb[0].mxu0
        %v768 = vpop.f32.mrb[0].mxu0
        %v769 = vadd.f32 %v674, %v768
        %v770 = vpop.f32.mrb[0].mxu0
        %771 = vdwg.mxu0
        %v772 = vadd.f32 %v758, %v404
        %v773 = vadd.f32 %v761, %v405
        %v774 = vadd.f32 %v766, %v406
        %v775 = vadd.f32 %v769, %v407
        %776 = vst [vmem:[%s392] sm:$0xff] %v772
        %777 = vst [vmem:[%s392 + $0x8] sm:$0xff] %v773
        %778 = vst [vmem:[%s392 + $0x10] sm:$0xff] %v774
        %779 = vst [vmem:[%s392 + $0x18] sm:$0xff] %v775
        %s780 = sand.u32 %s190, 1
        %s781 = scalar_lea.sflag [#allocation5], %s780
        %s782 = sand.u32 %s190, 1
        %s783 = smul.addr %s782, 32
        %s784 = scalar_lea.vmem [#allocation12], %s783
        // Predicated region
        $region77: #{tpu_custom_call.1} parent=39 // pred_check
          %p785 = pneg %p200
        $region78: #{tpu_custom_call.1} parent=39 // pred_check_branch
          %787 = sbr.rel (%p785) target = $region80
        $region79: #{tpu_custom_call.1} parent=39 // pred_region
          %s788 = smul.u32 4, %s31
          %s790 = ssub.s32 512, 512
          %791 = vsyncadd %s781, %s790
          %s792 = smul.addr %s30, 12
          %s793 = sadd.s32 %s788, %s792
          %s794 = smul.addr %s793, 128
          %s795 = scalar_lea.hbm %s5, %s794
          %s796 = sshll.u32 %s784, 4
          %s797 = int_to_ptr.vmem [resolvable:$true] %s796
          %802 = dma.vmem_to_hbm [thread:$0]  %s797, 512, %s795, %s781, 128, 128, 8
        $region80: #{tpu_custom_call.1} parent=39 // pred_fallthru
          _
      $region40: #{tpu_custom_call.1} parent=5 // pred_fallthru
        _
      %p803 = scmp.le.s32.totalorder 2, %s21
      // Predicated region
      $region81: #{tpu_custom_call.1} parent=5 // pred_check
        %p804 = pneg %p803
      $region82: #{tpu_custom_call.1} parent=5 // pred_check_branch
        %806 = sbr.rel (%p804) target = $region84
      $region83: #{tpu_custom_call.1} parent=5 // pred_region
        %s807 = ssub.s32 %s21, 2
        // Predicated region
        $region85: #{tpu_custom_call.1} parent=83 // pred_check
          %p808 = pneg %p206
        $region86: #{tpu_custom_call.1} parent=83 // pred_check_branch
          %810 = sbr.rel (%p808) target = $region88
        $region87: #{tpu_custom_call.1} parent=83 // pred_region
          %s811 = sand.u32 %s191, 1
          %s812 = scalar_lea.sflag [#allocation5], %s811
          %s813 = sand.u32 %s191, 1
          %s814 = smul.addr %s813, 32
          %s815 = scalar_lea.vmem [#allocation12], %s814
          %816 = dma.done %s812, 512
        $region88: #{tpu_custom_call.1} parent=83 // pred_fallthru
          _
      $region84: #{tpu_custom_call.1} parent=5 // pred_fallthru
        _
    $region6: #{tpu_custom_call.1} parent=1 // loop_footer
      %s25 = sadd.s32 1, %s21
    $region7: #{tpu_custom_call.1} parent=1 // loop_footer_branch
      %20 = sbr.rel target = $region3
    $region8: #{tpu_custom_call.1} parent=1 // loop_exit
      _
    %817 = vsyncpa [#allocation4], 1
    %s818 = scalar_lea.sflag [#allocation4], 1
    %819 = vsyncpa %s818, 1
    %820 = vsyncpa [#allocation7], 1
    %s821 = scalar_lea.sflag [#allocation7], 1
    %822 = vsyncpa %s821, 1
    %823 = vsyncpa [#allocation10], 1
    %824 = vsyncpa [#allocation5], 1
    %s825 = scalar_lea.sflag [#allocation5], 1
    %826 = vsyncpa %s825, 1

// kernel: tpu_custom_call.1
$region0: #{tpu_custom_call.1}
  #allocation0 [shape = 'u32[]', space=smem, size = 0x4, offset = 0x4, fixed_abs, tag = 'smem constant byte address 0x4 - core index']
  #allocation1 [shape = 'u32[144,128]{1,0:T(1,128)}', space=vmem, size = 0x12000, scoped, tag = 'internal scratch']
  #allocation2 [shape = 'f32[48,128]{1,0:T(8,128)}', space=vmem, size = 0x6000, scoped, tag = 'scratch operand']
  %s0 = inlined_call_operand.hbm [shape: f32[2,96,128], index: 0, kind: input, shape index: {}]
  %s1 = inlined_call_operand.hbm [shape: f32[2,96,128], index: 1, kind: input, shape index: {}]
  %s2 = inlined_call_operand.hbm [shape: f32[2,96,128], index: 2, kind: input, shape index: {}]
  %s3 = inlined_call_operand.hbm [shape: f32[16,128], index: 3, kind: input, shape index: {}]
  %s4 = inlined_call_operand.hbm [shape: bf16[128,128], index: 4, kind: input, shape index: {}]
  %s5 = inlined_call_operand.hbm [shape: f32[2,96,128], index: 5, kind: output, shape index: {}]
  %s6 = sld [smem:[#allocation0]]
  $region89: #{tpu_custom_call.1} parent=0
    _
  %s8 = ssub.s32 1, %s6
  %s9 = scalar_select 0, %s8, %s6
  $region1: #{tpu_custom_call.1} parent=0
    #allocation3 [shape = 'u8[32768]{0}', space=vmem, size = 0x8000, scoped, tag = 'input window, operand 0']
    #allocation4 [shape = 's32[2]{0}', space=sflag, size = 0x8, scoped, tag = 'scoped memory for tpu_custom_call.1']
    #allocation5 [shape = 's32[2]{0}', space=sflag, size = 0x8, scoped, tag = 'scoped memory for tpu_custom_call.1']
    #allocation6 [shape = 'u8[8192]{0}', space=vmem, size = 0x2000, scoped, tag = 'input window, operand 1']
    #allocation7 [shape = 's32[2]{0}', space=sflag, size = 0x8, scoped, tag = 'scoped memory for tpu_custom_call.1']
    #allocation8 [shape = 'u8[8192]{0}', space=vmem, size = 0x2000, scoped, tag = 'input window, operand 2']
    #allocation9 [shape = 'u8[8192]{0}', space=vmem, size = 0x2000, scoped, tag = 'input window, operand 3, single buffered']
    #allocation10 [shape = 's32[1]{0}', space=sflag, size = 0x4, scoped, tag = 'scoped memory for tpu_custom_call.1']
    #allocation11 [shape = 'u8[32768]{0}', space=vmem, size = 0x8000, scoped, tag = 'input window, operand 4, single buffered']
    #allocation12 [shape = 'u8[32768]{0}', space=vmem, size = 0x8000, scoped, tag = 'output window, operand 0']
    %10 = vsyncpa [#allocation4], 0
    %s11 = scalar_lea.sflag [#allocation4], 1
    %12 = vsyncpa %s11, 0
    %13 = vsyncpa [#allocation7], 0
    %s14 = scalar_lea.sflag [#allocation7], 1
    %15 = vsyncpa %s14, 0
    %16 = vsyncpa [#allocation10], 0
    %17 = vsyncpa [#allocation5], 0
    %s18 = scalar_lea.sflag [#allocation5], 1
    %19 = vsyncpa %s18, 0
    loop: start=0, step=1, limit=8
    $region2: #{tpu_custom_call.1} parent=1 // loop_pre_header
      _
    $region3: #{tpu_custom_call.1} parent=1 // loop_header
      %s21 = sphi 0, %s25
      %p22 = scmp.ge.s32.totalorder %s21, 8
      %s28 = sphi 0, %s40
      %s29 = sphi 0, %s36
      %s30 = sphi 0, %s28
      %s31 = sphi 0, %s29
      %s32 = sphi 0, %s30
      %s33 = sphi 0, %s31
      %s45 = sphi 0, %s47
      %s48 = sphi 0, %s45
      %s49 = sphi 0, %s48
      %s65 = sphi 0, %s49
      %s81 = sphi 0, %s83
      %s84 = sphi 0, %s81
      %s85 = sphi 0, %s84
      %s101 = sphi 0, %s85
      %s117 = sphi 0, %s119
      %s120 = sphi 0, %s117
      %s121 = sphi 0, %s120
      %s137 = sphi 0, %s121
      %s141 = sphi 0, %s141
      %s143 = sphi 0, %s141
      %s144 = sphi 0, %s143
      %s158 = sphi 0, %s144
      %s162 = sphi 0, %s162
      %s164 = sphi 0, %s162
      %s165 = sphi 0, %s164
      %s179 = sphi 0, %s165
      %s187 = sphi 0, %s189
      %s190 = sphi 0, %s187
      %s191 = sphi 0, %s190
      %s207 = sphi 0, %s191
    $region4: #{tpu_custom_call.1} parent=1 // loop_header_branch
      %24 = sbr.rel (%p22) target = $region8
    $region5: #{tpu_custom_call.1} parent=1 // loop_body
      %s26 = ssub.s32 %s21, 1
      %s27 = ssub.s32 %s21, 2
      %s34 = sadd.s32 1, %s29
      %p35 = scmp.ge.s32.totalorder %s34, 3
      %s36 = scalar_select %p35, 0, %s34
      %s37 = sadd.s32 1, %s28
      %s38 = scalar_select %p35, %s37, %s28
      %p39 = scmp.ge.s32.totalorder %s38, 2
      %s40 = scalar_select %p39, 0, %s38
      %s41 = ssub.s32 %s28, %s40
      %s42 = ssub.s32 %s29, %s36
      %s43 = sor.u32 %s41, %s42
      %p44 = scmp.eq.s32.totalorder %s43, 0
      %s46 = sadd.s32 %s45, 1
      %s47 = scalar_select %p44, %s45, %s46
      %p50 = pneg %p44
      %p51 = scmp.eq.s32.totalorder %s21, 5
      %p52 = por %p50, %p51
      %p53 = scmp.ne.s32.totalorder %s45, %s48
      %p54 = scmp.eq.s32.totalorder %s21, 0
      %p55 = por %p53, %p54
      %p56 = scmp.ne.s32.totalorder %s45, %s48
      %p57 = scmp.eq.s32.totalorder %s26, 5
      %p58 = por %p56, %p57
      %p59 = scmp.ne.s32.totalorder %s48, %s49
      %p60 = scmp.eq.s32.totalorder %s26, 0
      %p61 = por %p59, %p60
      %p62 = scmp.ne.s32.totalorder %s48, %s49
      %p63 = scmp.eq.s32.totalorder %s27, 5
      %p64 = por %p62, %p63
      %p66 = scmp.ne.s32.totalorder %s49, %s65
      %p67 = scmp.eq.s32.totalorder %s27, 0
      %p68 = por %p66, %p67
      %s69 = smul.u32 %s29, 4
      %s70 = ssub.s32 %s69, 1
      %p71 = scmp.gt.s32.totalorder %s70, 0
      %s72 = scalar_select %p71, %s70, 0
      %s73 = smul.u32 %s36, 4
      %s74 = ssub.s32 %s73, 1
      %p75 = scmp.gt.s32.totalorder %s74, 0
      %s76 = scalar_select %p75, %s74, 0
      %s77 = ssub.s32 %s28, %s40
      %s78 = ssub.s32 %s72, %s76
      %s79 = sor.u32 %s77, %s78
      %p80 = scmp.eq.s32.totalorder %s79, 0
      %s82 = sadd.s32 %s81, 1
      %s83 = scalar_select %p80, %s81, %s82
      %p86 = pneg %p80
      %p87 = scmp.eq.s32.totalorder %s21, 5
      %p88 = por %p86, %p87
      %p89 = scmp.ne.s32.totalorder %s81, %s84
      %p90 = scmp.eq.s32.totalorder %s21, 0
      %p91 = por %p89, %p90
      %p92 = scmp.ne.s32.totalorder %s81, %s84
      %p93 = scmp.eq.s32.totalorder %s26, 5
      %p94 = por %p92, %p93
      %p95 = scmp.ne.s32.totalorder %s84, %s85
      %p96 = scmp.eq.s32.totalorder %s26, 0
      %p97 = por %p95, %p96
      %p98 = scmp.ne.s32.totalorder %s84, %s85
      %p99 = scmp.eq.s32.totalorder %s27, 5
      %p100 = por %p98, %p99
      %p102 = scmp.ne.s32.totalorder %s85, %s101
      %p103 = scmp.eq.s32.totalorder %s27, 0
      %p104 = por %p102, %p103
      %s105 = sadd.s32 %s29, 1
      %s106 = smul.u32 %s105, 4
      %p107 = scmp.lt.s32.totalorder %s106, 11
      %s108 = scalar_select %p107, %s106, 11
      %s109 = sadd.s32 %s36, 1
      %s110 = smul.u32 %s109, 4
      %p111 = scmp.lt.s32.totalorder %s110, 11
      %s112 = scalar_select %p111, %s110, 11
      %s113 = ssub.s32 %s28, %s40
      %s114 = ssub.s32 %s108, %s112
      %s115 = sor.u32 %s113, %s114
      %p116 = scmp.eq.s32.totalorder %s115, 0
      %s118 = sadd.s32 %s117, 1
      %s119 = scalar_select %p116, %s117, %s118
      %p122 = pneg %p116
      %p123 = scmp.eq.s32.totalorder %s21, 5
      %p124 = por %p122, %p123
      %p125 = scmp.ne.s32.totalorder %s117, %s120
      %p126 = scmp.eq.s32.totalorder %s21, 0
      %p127 = por %p125, %p126
      %p128 = scmp.ne.s32.totalorder %s117, %s120
      %p129 = scmp.eq.s32.totalorder %s26, 5
      %p130 = por %p128, %p129
      %p131 = scmp.ne.s32.totalorder %s120, %s121
      %p132 = scmp.eq.s32.totalorder %s26, 0
      %p133 = por %p131, %p132
      %p134 = scmp.ne.s32.totalorder %s120, %s121
      %p135 = scmp.eq.s32.totalorder %s27, 5
      %p136 = por %p134, %p135
      %p138 = scmp.ne.s32.totalorder %s121, %s137
      %p139 = scmp.eq.s32.totalorder %s27, 0
      %p140 = por %p138, %p139
      %s142 = sadd.s32 %s141, 1
      %p145 = scmp.eq.s32.totalorder %s21, 5
      %p146 = scmp.ne.s32.totalorder %s141, %s143
      %p147 = scmp.eq.s32.totalorder %s21, 0
      %p148 = por %p146, %p147
      %p149 = scmp.ne.s32.totalorder %s141, %s143
      %p150 = scmp.eq.s32.totalorder %s26, 5
      %p151 = por %p149, %p150
      %p152 = scmp.ne.s32.totalorder %s143, %s144
      %p153 = scmp.eq.s32.totalorder %s26, 0
      %p154 = por %p152, %p153
      %p155 = scmp.ne.s32.totalorder %s143, %s144
      %p156 = scmp.eq.s32.totalorder %s27, 5
      %p157 = por %p155, %p156
      %p159 = scmp.ne.s32.totalorder %s144, %s158
      %p160 = scmp.eq.s32.totalorder %s27, 0
      %p161 = por %p159, %p160
      %s163 = sadd.s32 %s162, 1
      %p166 = scmp.eq.s32.totalorder %s21, 5
      %p167 = scmp.ne.s32.totalorder %s162, %s164
      %p168 = scmp.eq.s32.totalorder %s21, 0
      %p169 = por %p167, %p168
      %p170 = scmp.ne.s32.totalorder %s162, %s164
      %p171 = scmp.eq.s32.totalorder %s26, 5
      %p172 = por %p170, %p171
      %p173 = scmp.ne.s32.totalorder %s164, %s165
      %p174 = scmp.eq.s32.totalorder %s26, 0
      %p175 = por %p173, %p174
      %p176 = scmp.ne.s32.totalorder %s164, %s165
      %p177 = scmp.eq.s32.totalorder %s27, 5
      %p178 = por %p176, %p177
      %p180 = scmp.ne.s32.totalorder %s165, %s179
      %p181 = scmp.eq.s32.totalorder %s27, 0
      %p182 = por %p180, %p181
      %s183 = ssub.s32 %s28, %s40
      %s184 = ssub.s32 %s29, %s36
      %s185 = sor.u32 %s183, %s184
      %p186 = scmp.eq.s32.totalorder %s185, 0
      %s188 = sadd.s32 %s187, 1
      %s189 = scalar_select %p186, %s187, %s188
      %p192 = pneg %p186
      %p193 = scmp.eq.s32.totalorder %s21, 5
      %p194 = por %p192, %p193
      %p195 = scmp.ne.s32.totalorder %s187, %s190
      %p196 = scmp.eq.s32.totalorder %s21, 0
      %p197 = por %p195, %p196
      %p198 = scmp.ne.s32.totalorder %s187, %s190
      %p199 = scmp.eq.s32.totalorder %s26, 5
      %p200 = por %p198, %p199
      %p201 = scmp.ne.s32.totalorder %s190, %s191
      %p202 = scmp.eq.s32.totalorder %s26, 0
      %p203 = por %p201, %p202
      %p204 = scmp.ne.s32.totalorder %s190, %s191
      %p205 = scmp.eq.s32.totalorder %s27, 5
      %p206 = por %p204, %p205
      %p208 = scmp.ne.s32.totalorder %s191, %s207
      %p209 = scmp.eq.s32.totalorder %s27, 0
      %p210 = por %p208, %p209
      %p211 = scmp.le.s32.totalorder 1, %s21
      %p212 = scmp.lt.s32.totalorder %s21, 7
      %p213 = pnand %p211, %p212
      %p214 = pneg %p213
      // Predicated region
      $region9: #{tpu_custom_call.1} parent=5 // pred_check
        _
      $region10: #{tpu_custom_call.1} parent=5 // pred_check_branch
        %216 = sbr.rel (%p213) target = $region12
      $region11: #{tpu_custom_call.1} parent=5 // pred_region
        %s217 = ssub.s32 %s21, 1
        // Predicated region
        $region13: #{tpu_custom_call.1} parent=11 // pred_check
          %p218 = pneg %p154
        $region14: #{tpu_custom_call.1} parent=11 // pred_check_branch
          %220 = sbr.rel (%p218) target = $region16
        $region15: #{tpu_custom_call.1} parent=11 // pred_region
          %s222 = ssub.s32 256, 256
          %223 = vsyncadd [#allocation10], %s222
          %s224 = sshll.u32 [#allocation9], 4
          %s225 = int_to_ptr.vmem [resolvable:$true] %s224
          %230 = dma.hbm_to_vmem [thread:$0]  %s3, 256, %s225, [#allocation10], 128, 128, 8
        $region16: #{tpu_custom_call.1} parent=11 // pred_fallthru
          _
        // Predicated region
        $region17: #{tpu_custom_call.1} parent=11 // pred_check
          %p231 = pneg %p175
        $region18: #{tpu_custom_call.1} parent=11 // pred_check_branch
          %233 = sbr.rel (%p231) target = $region20
        $region19: #{tpu_custom_call.1} parent=11 // pred_region
          %s235 = ssub.s32 1024, 1024
          %236 = vsyncadd [#allocation10], %s235
          %s237 = sshll.u32 [#allocation11], 4
          %s238 = int_to_ptr.vmem [resolvable:$true] %s237
          %243 = dma.hbm_to_vmem [thread:$0]  %s4, 1024, %s238, [#allocation10], 64, 64, 4
        $region20: #{tpu_custom_call.1} parent=11 // pred_fallthru
          _
      $region12: #{tpu_custom_call.1} parent=5 // pred_fallthru
        _
      %p244 = scmp.lt.s32.totalorder %s21, 6
      // Predicated region
      $region21: #{tpu_custom_call.1} parent=5 // pred_check
        %p245 = pneg %p244
      $region22: #{tpu_custom_call.1} parent=5 // pred_check_branch
        %247 = sbr.rel (%p245) target = $region24
      $region23: #{tpu_custom_call.1} parent=5 // pred_region
        // Predicated region
        $region25: #{tpu_custom_call.1} parent=23 // pred_check
          %p248 = pneg %p55
        $region26: #{tpu_custom_call.1} parent=23 // pred_check_branch
          %250 = sbr.rel (%p248) target = $region28
        $region27: #{tpu_custom_call.1} parent=23 // pred_region
          %s251 = sand.u32 %s45, 1
          %s252 = scalar_lea.sflag [#allocation4], %s251
          %s253 = sand.u32 %s45, 1
          %s254 = smul.addr %s253, 32
          %s255 = scalar_lea.vmem [#allocation3], %s254
          %s256 = smul.u32 4, %s29
          %s258 = ssub.s32 512, 512
          %259 = vsyncadd %s252, %s258
          %s260 = smul.addr %s28, 12
          %s261 = sadd.s32 %s256, %s260
          %s262 = smul.addr %s261, 128
          %s263 = scalar_lea.hbm %s0, %s262
          %s264 = sshll.u32 %s255, 4
          %s265 = int_to_ptr.vmem [resolvable:$true] %s264
          %270 = dma.hbm_to_vmem [thread:$0]  %s263, 512, %s265, %s252, 128, 128, 8
        $region28: #{tpu_custom_call.1} parent=23 // pred_fallthru
          _
        // Predicated region
        $region29: #{tpu_custom_call.1} parent=23 // pred_check
          %p271 = pneg %p91
        $region30: #{tpu_custom_call.1} parent=23 // pred_check_branch
          %273 = sbr.rel (%p271) target = $region32
        $region31: #{tpu_custom_call.1} parent=23 // pred_region
          %s274 = sand.u32 %s21, 1
          %s275 = scalar_lea.sflag [#allocation7], %s274
          %s276 = sand.u32 %s81, 1
          %s277 = smul.addr %s276, 8
          %s278 = scalar_lea.vmem [#allocation6], %s277
          %s279 = smul.u32 %s29, 4
          %s280 = ssub.s32 %s279, 1
          %p281 = scmp.gt.s32.totalorder %s280, 0
          %s282 = scalar_select %p281, %s280, 0
          %s284 = ssub.s32 128, 128
          %285 = vsyncadd %s275, %s284
          %s286 = smul.addr %s28, 12
          %s287 = sadd.s32 %s282, %s286
          %s288 = smul.addr %s287, 128
          %s289 = scalar_lea.hbm %s1, %s288
          %s291 = sshll.u32 %s278, 4
          %s292 = int_to_ptr.vmem [resolvable:$true] %s291
          %294 = dma.hbm_to_vmem [thread:$0]  %s289, 128, %s292, %s275
        $region32: #{tpu_custom_call.1} parent=23 // pred_fallthru
          _
        // Predicated region
        $region33: #{tpu_custom_call.1} parent=23 // pred_check
          %p295 = pneg %p127
        $region34: #{tpu_custom_call.1} parent=23 // pred_check_branch
          %297 = sbr.rel (%p295) target = $region36
        $region35: #{tpu_custom_call.1} parent=23 // pred_region
          %s298 = sand.u32 %s21, 1
          %s299 = scalar_lea.sflag [#allocation7], %s298
          %s300 = sand.u32 %s117, 1
          %s301 = smul.addr %s300, 8
          %s302 = scalar_lea.vmem [#allocation8], %s301
          %s303 = sadd.s32 %s29, 1
          %s304 = smul.u32 %s303, 4
          %p305 = scmp.lt.s32.totalorder %s304, 11
          %s306 = scalar_select %p305, %s304, 11
          %s308 = ssub.s32 128, 128
          %309 = vsyncadd %s299, %s308
          %s310 = smul.addr %s28, 12
          %s311 = sadd.s32 %s306, %s310
          %s312 = smul.addr %s311, 128
          %s313 = scalar_lea.hbm %s2, %s312
          %s315 = sshll.u32 %s302, 4
          %s316 = int_to_ptr.vmem [resolvable:$true] %s315
          %318 = dma.hbm_to_vmem [thread:$0]  %s313, 128, %s316, %s299
        $region36: #{tpu_custom_call.1} parent=23 // pred_fallthru
          _
      $region24: #{tpu_custom_call.1} parent=5 // pred_fallthru
        _
      %p319 = scmp.le.s32.totalorder 1, %s21
      %p320 = scmp.lt.s32.totalorder %s21, 7
      %p321 = pnand %p319, %p320
      %p322 = pneg %p321
      // Predicated region
      $region37: #{tpu_custom_call.1} parent=5 // pred_check
        _
      $region38: #{tpu_custom_call.1} parent=5 // pred_check_branch
        %324 = sbr.rel (%p321) target = $region40
      $region39: #{tpu_custom_call.1} parent=5 // pred_region
        %s325 = ssub.s32 %s21, 1
        %s326 = sand.u32 %s48, 1
        %s327 = scalar_lea.sflag [#allocation4], %s326
        %s328 = sand.u32 %s48, 1
        %s329 = smul.addr %s328, 32
        %s330 = scalar_lea.vmem [#allocation3], %s329
        // Predicated region
        $region41: #{tpu_custom_call.1} parent=39 // pred_check
          %p331 = pneg %p61
        $region42: #{tpu_custom_call.1} parent=39 // pred_check_branch
          %333 = sbr.rel (%p331) target = $region44
        $region43: #{tpu_custom_call.1} parent=39 // pred_region
          %334 = dma.done %s327, 512
        $region44: #{tpu_custom_call.1} parent=39 // pred_fallthru
          _
        %s335 = sand.u32 %s26, 1
        %s336 = scalar_lea.sflag [#allocation7], %s335
        %s337 = sand.u32 %s84, 1
        %s338 = smul.addr %s337, 8
        %s339 = scalar_lea.vmem [#allocation6], %s338
        // Predicated region
        $region45: #{tpu_custom_call.1} parent=39 // pred_check
          %p340 = pneg %p97
        $region46: #{tpu_custom_call.1} parent=39 // pred_check_branch
          %342 = sbr.rel (%p340) target = $region48
        $region47: #{tpu_custom_call.1} parent=39 // pred_region
          %343 = dma.done %s336, 128
        $region48: #{tpu_custom_call.1} parent=39 // pred_fallthru
          _
        %s344 = sand.u32 %s26, 1
        %s345 = scalar_lea.sflag [#allocation7], %s344
        %s346 = sand.u32 %s120, 1
        %s347 = smul.addr %s346, 8
        %s348 = scalar_lea.vmem [#allocation8], %s347
        // Predicated region
        $region49: #{tpu_custom_call.1} parent=39 // pred_check
          %p349 = pneg %p133
        $region50: #{tpu_custom_call.1} parent=39 // pred_check_branch
          %351 = sbr.rel (%p349) target = $region52
        $region51: #{tpu_custom_call.1} parent=39 // pred_region
          %352 = dma.done %s345, 128
        $region52: #{tpu_custom_call.1} parent=39 // pred_fallthru
          _
        // Predicated region
        $region53: #{tpu_custom_call.1} parent=39 // pred_check
          %p353 = pneg %p154
        $region54: #{tpu_custom_call.1} parent=39 // pred_check_branch
          %355 = sbr.rel (%p353) target = $region56
        $region55: #{tpu_custom_call.1} parent=39 // pred_region
          %356 = dma.done [#allocation10], 256
        $region56: #{tpu_custom_call.1} parent=39 // pred_fallthru
          _
        // Predicated region
        $region57: #{tpu_custom_call.1} parent=39 // pred_check
          %p357 = pneg %p175
        $region58: #{tpu_custom_call.1} parent=39 // pred_check_branch
          %359 = sbr.rel (%p357) target = $region60
        $region59: #{tpu_custom_call.1} parent=39 // pred_region
          %360 = dma.done [#allocation10], 1024
        $region60: #{tpu_custom_call.1} parent=39 // pred_fallthru
          _
        %s361 = sand.u32 %s48, 1
        %s362 = scalar_lea.sflag [#allocation4], %s361
        %s363 = sand.u32 %s48, 1
        %s364 = smul.addr %s363, 32
        %s365 = scalar_lea.vmem [#allocation3], %s364
        %p366 = pneg %p61
        %p367 = pneg %p58
        %s368 = sand.u32 %s26, 1
        %s369 = scalar_lea.sflag [#allocation7], %s368
        %s370 = sand.u32 %s84, 1
        %s371 = smul.addr %s370, 8
        %s372 = scalar_lea.vmem [#allocation6], %s371
        %p373 = pneg %p97
        %p374 = pneg %p94
        %s375 = sand.u32 %s26, 1
        %s376 = scalar_lea.sflag [#allocation7], %s375
        %s377 = sand.u32 %s120, 1
        %s378 = smul.addr %s377, 8
        %s379 = scalar_lea.vmem [#allocation8], %s378
        %p380 = pneg %p133
        %p381 = pneg %p130
        %p382 = pneg %p154
        %p383 = pneg %p151
        %p384 = pneg %p175
        %p385 = pneg %p172
        %p386 = pneg %p203
        %p387 = pneg %p200
        %s388 = sand.u32 %s190, 1
        %s389 = scalar_lea.sflag [#allocation5], %s388
        %s390 = sand.u32 %s190, 1
        %s391 = smul.addr %s390, 32
        %s392 = scalar_lea.vmem [#allocation12], %s391
        %s393 = smul.u32 4, %s31
        %s394 = smul.u32 %s31, 4
        %s395 = ssub.s32 %s394, 1
        %p396 = scmp.gt.s32.totalorder %s395, 0
        %s397 = scalar_select %p396, %s395, 0
        %s398 = sadd.s32 %s31, 1
        %s399 = smul.u32 %s398, 4
        %p400 = scmp.lt.s32.totalorder %s399, 11
        %s401 = scalar_select %p400, %s399, 11
        %s402 = smul.u32 4, %s31
        %v404 = vld [vmem:[%s330] sm:$0xff]
        %v405 = vld [vmem:[%s330 + $0x8] sm:$0xff]
        %v406 = vld [vmem:[%s330 + $0x10] sm:$0xff]
        %v407 = vld [vmem:[%s330 + $0x18] sm:$0xff]
        %408 = vst [vmem:[#allocation2 + $0x8] sm:$0xff] %v404
        %409 = vst [vmem:[#allocation2 + $0x10] sm:$0xff] %v405
        %410 = vst [vmem:[#allocation2 + $0x18] sm:$0xff] %v406
        %411 = vst [vmem:[#allocation2 + $0x20] sm:$0xff] %v407
        %p412 = scmp.gt.s32.totalorder %s31, 0
        // Predicated region
        $region61: #{tpu_custom_call.1} parent=39 // pred_check
          %p413 = pneg %p412
        $region62: #{tpu_custom_call.1} parent=39 // pred_check_branch
          %415 = sbr.rel (%p413) target = $region64
        $region63: #{tpu_custom_call.1} parent=39 // pred_region
          %v416 = vld [vmem:[%s339] sm:$0xff]
          %417 = vst [vmem:[#allocation2] sm:$0xff] %v416
        $region64: #{tpu_custom_call.1} parent=39 // pred_fallthru
          _
        %p418 = scmp.eq.s32.totalorder %s31, 0
        // Predicated region
        $region65: #{tpu_custom_call.1} parent=39 // pred_check
          %p419 = pneg %p418
        $region66: #{tpu_custom_call.1} parent=39 // pred_check_branch
          %421 = sbr.rel (%p419) target = $region68
        $region67: #{tpu_custom_call.1} parent=39 // pred_region
          %422 = vst [vmem:[#allocation2] sm:$0xff] 0.0
        $region68: #{tpu_custom_call.1} parent=39 // pred_fallthru
          _
        %p423 = scmp.lt.s32.totalorder %s31, 2
        // Predicated region
        $region69: #{tpu_custom_call.1} parent=39 // pred_check
          %p424 = pneg %p423
        $region70: #{tpu_custom_call.1} parent=39 // pred_check_branch
          %426 = sbr.rel (%p424) target = $region72
        $region71: #{tpu_custom_call.1} parent=39 // pred_region
          %v427 = vld [vmem:[%s348] sm:$0xff]
          %428 = vst [vmem:[#allocation2 + $0x28] sm:$0xff] %v427
        $region72: #{tpu_custom_call.1} parent=39 // pred_fallthru
          _
        %p429 = scmp.eq.s32.totalorder %s31, 2
        // Predicated region
        $region73: #{tpu_custom_call.1} parent=39 // pred_check
          %p430 = pneg %p429
        $region74: #{tpu_custom_call.1} parent=39 // pred_check_branch
          %432 = sbr.rel (%p430) target = $region76
        $region75: #{tpu_custom_call.1} parent=39 // pred_region
          %433 = vst [vmem:[#allocation2 + $0x28] sm:$0xff] 0.0
        $region76: #{tpu_custom_call.1} parent=39 // pred_fallthru
          _
        %v434 = vld [vmem:[#allocation2 + $0x5] sm:$0xff]
        %v435 = vld [vmem:[#allocation2 + $0xd] sm:$0xff]
        %v436 = vld [vmem:[#allocation2 + $0x15] sm:$0xff]
        %v437 = vld [vmem:[#allocation2 + $0x1d] sm:$0xff]
        %v438 = vld [vmem:[#allocation9] sm:$0x1]
        %v439 = vlaneseq
        %v440 = vshrl.u32 %v439, 7
        %v441 = vsub.s32 0, %v440
        %v442 = vrot.slane %v438, %v441
        %v443 = vmul.f32 %v434, %v442
        %v444 = vmul.f32 %v435, %v442
        %v445 = vmul.f32 %v436, %v442
        %v446 = vmul.f32 %v437, %v442
        %v447 = vld [vmem:[#allocation9 + $0x7] sm:$0x1]
        %v448 = vlaneseq
        %v449 = vshrl.u32 %v448, 7
        %v450 = vsub.s32 0, %v449
        %v451 = vrot.slane %v447, %v450
        %v452 = vadd.f32 %v443, %v451
        %v453 = vadd.f32 %v444, %v451
        %v454 = vadd.f32 %v445, %v451
        %v455 = vadd.f32 %v446, %v451
        %v456 = vld [vmem:[#allocation2 + $0x6] sm:$0xff]
        %v457 = vld [vmem:[#allocation2 + $0xe] sm:$0xff]
        %v458 = vld [vmem:[#allocation2 + $0x16] sm:$0xff]
        %v459 = vld [vmem:[#allocation2 + $0x1e] sm:$0xff]
        %v460 = vld [vmem:[#allocation9 + $0x1] sm:$0x1]
        %v461 = vlaneseq
        %v462 = vshrl.u32 %v461, 7
        %v463 = vsub.s32 0, %v462
        %v464 = vrot.slane %v460, %v463
        %v465 = vmul.f32 %v456, %v464
        %v466 = vmul.f32 %v457, %v464
        %v467 = vmul.f32 %v458, %v464
        %v468 = vmul.f32 %v459, %v464
        %v469 = vadd.f32 %v452, %v465
        %v470 = vadd.f32 %v453, %v466
        %v471 = vadd.f32 %v454, %v467
        %v472 = vadd.f32 %v455, %v468
        %v473 = vld [vmem:[#allocation2 + $0x7] sm:$0xff]
        %v474 = vld [vmem:[#allocation2 + $0xf] sm:$0xff]
        %v475 = vld [vmem:[#allocation2 + $0x17] sm:$0xff]
        %v476 = vld [vmem:[#allocation2 + $0x1f] sm:$0xff]
        %v477 = vld [vmem:[#allocation9 + $0x2] sm:$0x1]
        %v478 = vlaneseq
        %v479 = vshrl.u32 %v478, 7
        %v480 = vsub.s32 0, %v479
        %v481 = vrot.slane %v477, %v480
        %v482 = vmul.f32 %v473, %v481
        %v483 = vmul.f32 %v474, %v481
        %v484 = vmul.f32 %v475, %v481
        %v485 = vmul.f32 %v476, %v481
        %v486 = vadd.f32 %v469, %v482
        %v487 = vadd.f32 %v470, %v483
        %v488 = vadd.f32 %v471, %v484
        %v489 = vadd.f32 %v472, %v485
        %v490 = vld [vmem:[#allocation2 + $0x8] sm:$0xff]
        %v491 = vld [vmem:[#allocation2 + $0x10] sm:$0xff]
        %v492 = vld [vmem:[#allocation2 + $0x18] sm:$0xff]
        %v493 = vld [vmem:[#allocation2 + $0x20] sm:$0xff]
        %v494 = vld [vmem:[#allocation9 + $0x3] sm:$0x1]
        %v495 = vlaneseq
        %v496 = vshrl.u32 %v495, 7
        %v497 = vsub.s32 0, %v496
        %v498 = vrot.slane %v494, %v497
        %v499 = vmul.f32 %v490, %v498
        %v500 = vmul.f32 %v491, %v498
        %v501 = vmul.f32 %v492, %v498
        %v502 = vmul.f32 %v493, %v498
        %v503 = vadd.f32 %v486, %v499
        %v504 = vadd.f32 %v487, %v500
        %v505 = vadd.f32 %v488, %v501
        %v506 = vadd.f32 %v489, %v502
        %v507 = vld [vmem:[#allocation2 + $0x9] sm:$0xff]
        %v508 = vld [vmem:[#allocation2 + $0x11] sm:$0xff]
        %v509 = vld [vmem:[#allocation2 + $0x19] sm:$0xff]
        %v510 = vld [vmem:[#allocation2 + $0x21] sm:$0xff]
        %v511 = vld [vmem:[#allocation9 + $0x4] sm:$0x1]
        %v512 = vlaneseq
        %v513 = vshrl.u32 %v512, 7
        %v514 = vsub.s32 0, %v513
        %v515 = vrot.slane %v511, %v514
        %v516 = vmul.f32 %v507, %v515
        %v517 = vmul.f32 %v508, %v515
        %v518 = vmul.f32 %v509, %v515
        %v519 = vmul.f32 %v510, %v515
        %v520 = vadd.f32 %v503, %v516
        %v521 = vadd.f32 %v504, %v517
        %v522 = vadd.f32 %v505, %v518
        %v523 = vadd.f32 %v506, %v519
        %v524 = vld [vmem:[#allocation2 + $0xa] sm:$0xff]
        %v525 = vld [vmem:[#allocation2 + $0x12] sm:$0xff]
        %v526 = vld [vmem:[#allocation2 + $0x1a] sm:$0xff]
        %v527 = vld [vmem:[#allocation2 + $0x22] sm:$0xff]
        %v528 = vld [vmem:[#allocation9 + $0x5] sm:$0x1]
        %v529 = vlaneseq
        %v530 = vshrl.u32 %v529, 7
        %v531 = vsub.s32 0, %v530
        %v532 = vrot.slane %v528, %v531
        %v533 = vmul.f32 %v524, %v532
        %v534 = vmul.f32 %v525, %v532
        %v535 = vmul.f32 %v526, %v532
        %v536 = vmul.f32 %v527, %v532
        %v537 = vadd.f32 %v520, %v533
        %v538 = vadd.f32 %v521, %v534
        %v539 = vadd.f32 %v522, %v535
        %v540 = vadd.f32 %v523, %v536
        %v541 = vld [vmem:[#allocation2 + $0xb] sm:$0xff]
        %v542 = vld [vmem:[#allocation2 + $0x13] sm:$0xff]
        %v543 = vld [vmem:[#allocation2 + $0x1b] sm:$0xff]
        %v544 = vld [vmem:[#allocation2 + $0x23] sm:$0xff]
        %v545 = vld [vmem:[#allocation9 + $0x6] sm:$0x1]
        %v546 = vlaneseq
        %v547 = vshrl.u32 %v546, 7
        %v548 = vsub.s32 0, %v547
        %v549 = vrot.slane %v545, %v548
        %v550 = vmul.f32 %v541, %v549
        %v551 = vmul.f32 %v542, %v549
        %v552 = vmul.f32 %v543, %v549
        %v553 = vmul.f32 %v544, %v549
        %v554 = vadd.f32 %v537, %v550
        %v555 = vadd.f32 %v538, %v551
        %v556 = vadd.f32 %v539, %v552
        %v557 = vadd.f32 %v540, %v553
        %558 = vadd.xlane.f32.xlu0 %v554
        %v559 = vpop.xlane.xlu0 %558
        %560 = vadd.xlane.f32.xlu0 %v555
        %v561 = vpop.xlane.xlu0 %560
        %562 = vadd.xlane.f32.xlu0 %v556
        %v563 = vpop.xlane.xlu0 %562
        %564 = vadd.xlane.f32.xlu0 %v557
        %v565 = vpop.xlane.xlu0 %564
        %v566 = vmul.f32 %v554, %v554
        %v567 = vmul.f32 %v555, %v555
        %v568 = vmul.f32 %v556, %v556
        %v569 = vmul.f32 %v557, %v557
        %570 = vadd.xlane.f32.xlu0 %v566
        %v571 = vpop.xlane.xlu0 %570
        %572 = vadd.xlane.f32.xlu0 %v567
        %v573 = vpop.xlane.xlu0 %572
        %574 = vadd.xlane.f32.xlu0 %v568
        %v575 = vpop.xlane.xlu0 %574
        %576 = vadd.xlane.f32.xlu0 %v569
        %v577 = vpop.xlane.xlu0 %576
        %v578 = vmul.f32 %v559, 0.03125
        %v579 = vmul.f32 %v561, 0.03125
        %v580 = vmul.f32 %v563, 0.03125
        %v581 = vmul.f32 %v565, 0.03125
        %v582 = vmul.f32 %v571, 0.03125
        %v583 = vmul.f32 %v573, 0.03125
        %v584 = vmul.f32 %v575, 0.03125
        %v585 = vmul.f32 %v577, 0.03125
        %v586 = vmul.f32 %v578, %v578
        %v587 = vmul.f32 %v579, %v579
        %v588 = vmul.f32 %v580, %v580
        %v589 = vmul.f32 %v581, %v581
        %v590 = vsub.f32 %v582, %v586
        %v591 = vsub.f32 %v583, %v587
        %v592 = vsub.f32 %v584, %v588
        %v593 = vsub.f32 %v585, %v589
        %v594 = vmax.f32 %v590, 0.0
        %v595 = vmax.f32 %v591, 0.0
        %v596 = vmax.f32 %v592, 0.0
        %v597 = vmax.f32 %v593, 0.0
        %v598 = vsub.f32 %v554, %v578
        %v599 = vsub.f32 %v555, %v579
        %v600 = vsub.f32 %v556, %v580
        %v601 = vsub.f32 %v557, %v581
        %v602 = vadd.f32 %v594, 1e-05
        %v603 = vadd.f32 %v595, 1e-05
        %v604 = vadd.f32 %v596, 1e-05
        %v605 = vadd.f32 %v597, 1e-05
        %v606 = vrsqrt.pop %v602
        %v607 = vrsqrt.pop %v603
        %v608 = vrsqrt.pop %v604
        %v609 = vrsqrt.pop %v605
        %v610 = vmul.f32 %v598, %v606
        %v611 = vmul.f32 %v599, %v607
        %v612 = vmul.f32 %v600, %v608
        %v613 = vmul.f32 %v601, %v609
        %v614 = vld [vmem:[#allocation9 + $0x8] sm:$0x1]
        %v615 = vlaneseq
        %v616 = vshrl.u32 %v615, 7
        %v617 = vsub.s32 0, %v616
        %v618 = vrot.slane %v614, %v617
        %v619 = vmul.f32 %v610, %v618
        %v620 = vmul.f32 %v611, %v618
        %v621 = vmul.f32 %v612, %v618
        %v622 = vmul.f32 %v613, %v618
        %v623 = vld [vmem:[#allocation9 + $0x9] sm:$0x1]
        %v624 = vlaneseq
        %v625 = vshrl.u32 %v624, 7
        %v626 = vsub.s32 0, %v625
        %v627 = vrot.slane %v623, %v626
        %v628 = vadd.f32 %v619, %v627
        %v629 = vadd.f32 %v620, %v627
        %v630 = vadd.f32 %v621, %v627
        %v631 = vadd.f32 %v622, %v627
        %v632 = vmul.f32 %v628, 0.5
        %v633 = vmul.f32 %v629, 0.5
        %v634 = vmul.f32 %v630, 0.5
        %v635 = vmul.f32 %v631, 0.5
        %v636 = vmul.f32 %v628, 0.70710677
        %v637 = vmul.f32 %v629, 0.70710677
        %v638 = vmul.f32 %v630, 0.70710677
        %v639 = vmul.f32 %v631, 0.70710677
        %v640 = verf.f32.pop %v636
        %v641 = verf.f32.pop %v637
        %v642 = verf.f32.pop %v638
        %v643 = verf.f32.pop %v639
        %v644 = vadd.f32 %v640, 1.0
        %v645 = vadd.f32 %v641, 1.0
        %v646 = vadd.f32 %v642, 1.0
        %v647 = vadd.f32 %v643, 1.0
        %v648 = vmul.f32 %v632, %v644
        %v649 = vmul.f32 %v633, %v645
        %v650 = vmul.f32 %v634, %v646
        %v651 = vmul.f32 %v635, %v647
        %v652 = vpack.c.bf16 %v649, %v648
        %v653 = vpack.c.bf16 %v651, %v650
        %v654 = vld [vmem:[#allocation11] sm:$0xf]
        %v655 = vld [vmem:[#allocation11 + $0x4] sm:$0xf]
        %v656 = vld [vmem:[#allocation11 + $0x8] sm:$0xf]
        %v657 = vld [vmem:[#allocation11 + $0xc] sm:$0xf]
        %v658 = vld [vmem:[#allocation11 + $0x10] sm:$0xf]
        %v659 = vld [vmem:[#allocation11 + $0x14] sm:$0xf]
        %v660 = vld [vmem:[#allocation11 + $0x18] sm:$0xf]
        %v661 = vld [vmem:[#allocation11 + $0x1c] sm:$0xf]
        %v662 = vld [vmem:[#allocation11 + $0x20] sm:$0xf]
        %v663 = vld [vmem:[#allocation11 + $0x24] sm:$0xf]
        %v664 = vld [vmem:[#allocation11 + $0x28] sm:$0xf]
        %v665 = vld [vmem:[#allocation11 + $0x2c] sm:$0xf]
        %v666 = vld [vmem:[#allocation11 + $0x30] sm:$0xf]
        %v667 = vld [vmem:[#allocation11 + $0x34] sm:$0xf]
        %v668 = vld [vmem:[#allocation11 + $0x38] sm:$0xf]
        %v669 = vld [vmem:[#allocation11 + $0x3c] sm:$0xf]
        %v670 = vld [vmem:[#allocation9 + $0xa] sm:$0x1]
        %v671 = vlaneseq
        %v672 = vshrl.u32 %v671, 7
        %v673 = vsub.s32 0, %v672
        %v674 = vrot.slane %v670, %v673
        %v691 = vunpack.c.l.b16 %v654
        %v692 = vunpack.c.l.b16 %v655
        %v693 = vunpack.c.l.b16 %v656
        %v694 = vunpack.c.l.b16 %v657
        %v695 = vunpack.c.l.b16 %v658
        %v696 = vunpack.c.l.b16 %v659
        %v697 = vunpack.c.l.b16 %v660
        %v698 = vunpack.c.l.b16 %v661
        %v699 = vunpack.c.l.b16 %v662
        %v700 = vunpack.c.l.b16 %v663
        %v701 = vunpack.c.l.b16 %v664
        %v702 = vunpack.c.l.b16 %v665
        %v703 = vunpack.c.l.b16 %v666
        %v704 = vunpack.c.l.b16 %v667
        %v705 = vunpack.c.l.b16 %v668
        %v706 = vunpack.c.l.b16 %v669
        %v707 = vpack.c.b16 %v692, %v691
        %v708 = vpack.c.b16 %v694, %v693
        %v709 = vpack.c.b16 %v696, %v695
        %v710 = vpack.c.b16 %v698, %v697
        %v711 = vpack.c.b16 %v700, %v699
        %v712 = vpack.c.b16 %v702, %v701
        %v713 = vpack.c.b16 %v704, %v703
        %v714 = vpack.c.b16 %v706, %v705
        %723 = vmatprep.subr.bf16.mxu0 0
        %724 = vmatpush1.bf16.msra.mxu0 %v707
        %725 = vmatprep.subr.bf16.mxu0 0
        %726 = vmatpush1.bf16.msra.mxu0 %v708
        %727 = vmatprep.subr.bf16.mxu0 0
        %728 = vmatpush1.bf16.msra.mxu0 %v709
        %729 = vmatprep.subr.bf16.mxu0 0
        %730 = vmatpush1.bf16.msra.mxu0 %v710
        %731 = vmatprep.subr.bf16.mxu0 0
        %732 = vmatpush1.bf16.msra.mxu0 %v711
        %733 = vmatprep.subr.bf16.mxu0 0
        %734 = vmatpush1.bf16.msra.mxu0 %v712
        %735 = vmatprep.subr.bf16.mxu0 0
        %736 = vmatpush1.bf16.msra.mxu0 %v713
        %737 = vmatprep.subr.bf16.mxu0 0
        %738 = vmatpush1.bf16.msra.mxu0 %v714
        %739 = vmatprep.subr.bf16.mxu0 0
        %740 = vmatpush1.bf16.msra.mxu0 0
        %741 = vmatprep.subr.bf16.mxu0 0
        %742 = vmatpush1.bf16.msra.mxu0 0
        %743 = vmatprep.subr.bf16.mxu0 0
        %744 = vmatpush1.bf16.msra.mxu0 0
        %745 = vmatprep.subr.bf16.mxu0 0
        %746 = vmatpush1.bf16.msra.mxu0 0
        %747 = vmatprep.subr.bf16.mxu0 0
        %748 = vmatpush1.bf16.msra.mxu0 0
        %749 = vmatprep.subr.bf16.mxu0 0
        %750 = vmatpush1.bf16.msra.mxu0 0
        %751 = vmatprep.subr.bf16.mxu0 0
        %752 = vmatpush1.bf16.msra.mxu0 0
        %753 = vmatprep.subr.bf16.mxu0 0
        %754 = vmatpush1.bf16.msra.mxu0 0
        %755 = vmatprep.mubr.bf16.mxu0 0
        %756 = vmatmul.mubr.bf16.gmra.mrb[0].mxu0 %v652
        %v757 = vpop.f32.mrb[0].mxu0
        %v758 = vadd.f32 %v674, %v757
        %v759 = vpop.f32.mrb[0].mxu0
        %v760 = vpop.f32.mrb[0].mxu0
        %v761 = vadd.f32 %v674, %v760
        %v762 = vpop.f32.mrb[0].mxu0
        %763 = vmatprep.mubr.bf16.mxu0 0
        %764 = vmatmul.mubr.bf16.gmra.mrb[0].mxu0 %v653
        %v765 = vpop.f32.mrb[0].mxu0
        %v766 = vadd.f32 %v674, %v765
        %v767 = vpop.f32.mrb[0].mxu0
        %v768 = vpop.f32.mrb[0].mxu0
        %v769 = vadd.f32 %v674, %v768
        %v770 = vpop.f32.mrb[0].mxu0
        %771 = vdwg.mxu0
        %v772 = vadd.f32 %v758, %v404
        %v773 = vadd.f32 %v761, %v405
        %v774 = vadd.f32 %v766, %v406
        %v775 = vadd.f32 %v769, %v407
        %776 = vst [vmem:[%s392] sm:$0xff] %v772
        %777 = vst [vmem:[%s392 + $0x8] sm:$0xff] %v773
        %778 = vst [vmem:[%s392 + $0x10] sm:$0xff] %v774
        %779 = vst [vmem:[%s392 + $0x18] sm:$0xff] %v775
        %s780 = sand.u32 %s190, 1
        %s781 = scalar_lea.sflag [#allocation5], %s780
        %s782 = sand.u32 %s190, 1
        %s783 = smul.addr %s782, 32
        %s784 = scalar_lea.vmem [#allocation12], %s783
        // Predicated region
        $region77: #{tpu_custom_call.1} parent=39 // pred_check
          %p785 = pneg %p200
        $region78: #{tpu_custom_call.1} parent=39 // pred_check_branch
          %787 = sbr.rel (%p785) target = $region80
        $region79: #{tpu_custom_call.1} parent=39 // pred_region
          %s788 = smul.u32 4, %s31
          %s790 = ssub.s32 512, 512
          %791 = vsyncadd %s781, %s790
          %s792 = smul.addr %s30, 12
          %s793 = sadd.s32 %s788, %s792
          %s794 = smul.addr %s793, 128
          %s795 = scalar_lea.hbm %s5, %s794
          %s796 = sshll.u32 %s784, 4
          %s797 = int_to_ptr.vmem [resolvable:$true] %s796
          %802 = dma.vmem_to_hbm [thread:$0]  %s797, 512, %s795, %s781, 128, 128, 8
        $region80: #{tpu_custom_call.1} parent=39 // pred_fallthru
          _
      $region40: #{tpu_custom_call.1} parent=5 // pred_fallthru
        _
      %p803 = scmp.le.s32.totalorder 2, %s21
      // Predicated region
      $region81: #{tpu_custom_call.1} parent=5 // pred_check
        %p804 = pneg %p803
      $region82: #{tpu_custom_call.1} parent=5 // pred_check_branch
        %806 = sbr.rel (%p804) target = $region84
      $region83: #{tpu_custom_call.1} parent=5 // pred_region
        %s807 = ssub.s32 %s21, 2
        // Predicated region
        $region85: #{tpu_custom_call.1} parent=83 // pred_check
          %p808 = pneg %p206
        $region86: #{tpu_custom_call.1} parent=83 // pred_check_branch
          %810 = sbr.rel (%p808) target = $region88
        $region87: #{tpu_custom_call.1} parent=83 // pred_region
          %s811 = sand.u32 %s191, 1
          %s812 = scalar_lea.sflag [#allocation5], %s811
          %s813 = sand.u32 %s191, 1
          %s814 = smul.addr %s813, 32
          %s815 = scalar_lea.vmem [#allocation12], %s814
          %816 = dma.done %s812, 512
        $region88: #{tpu_custom_call.1} parent=83 // pred_fallthru
          _
      $region84: #{tpu_custom_call.1} parent=5 // pred_fallthru
        _
    $region6: #{tpu_custom_call.1} parent=1 // loop_footer
      %s25 = sadd.s32 1, %s21
    $region7: #{tpu_custom_call.1} parent=1 // loop_footer_branch
      %20 = sbr.rel target = $region3
    $region8: #{tpu_custom_call.1} parent=1 // loop_exit
      _
    %817 = vsyncpa [#allocation4], 1
    %s818 = scalar_lea.sflag [#allocation4], 1
    %819 = vsyncpa %s818, 1
    %820 = vsyncpa [#allocation7], 1
    %s821 = scalar_lea.sflag [#allocation7], 1
    %822 = vsyncpa %s821, 1
    %823 = vsyncpa [#allocation10], 1
    %824 = vsyncpa [#allocation5], 1
    %s825 = scalar_lea.sflag [#allocation5], 1
    %826 = vsyncpa %s825, 1

</llo_original>
